<compile_context>
chip_gen: v6e
topology: v6e:2x2x1
jax: 0.10.0
libtpu: 0.0.40
codegen_flags: <defaults>
</compile_context>

<pallas_src>
import jax
import jax.numpy as jnp
from jax.experimental import pallas as pl
from jax.experimental.pallas import tpu as pltpu

EMBED_DIM = 32   # self.embedding_dim
HIDDEN = 32      # self.lstm_size
NUM_LAYERS = 1   # self.num_layers
LANE = 128       # TPU lane width


def _lstm_forward_kernel(ids_ref, emb_ref, wih_ref, whh_ref, b_ref,
                         wfc_ref, bfc_ref, h0_ref, c0_ref,
                         logits_ref, hn_ref, cn_ref, x_sc):
    """Whole forward in one invocation: gather -> LSTM recurrence -> FC head."""
    B, T = ids_ref.shape          # static (SMEM token-id table)
    H = HIDDEN

    # ---- fused embedding gather: x_sc row (t*B + b) = embedding[ids[b, t]]
    for t in range(T):
        for b in range(B):
            tok = ids_ref[b, t]                                   # SMEM scalar
            x_sc[pl.ds(t * B + b, 1), :] = emb_ref[pl.ds(tok, 1), :]

    # ---- hoisted input projection for ALL timesteps + pre-summed bias
    #      (one MXU matmul; removes the x_t matmul from the recurrence path)
    gx = (jnp.dot(x_sc[...], wih_ref[...], preferred_element_type=jnp.float32)
          + b_ref[...])                                           # (T*B, 4H)

    # ---- sequential recurrence, fully unrolled (T small & static)
    whh = whh_ref[...]                                            # hoisted
    h = h0_ref[...]
    c = c0_ref[...]
    for t in range(T):
        gates = gx[t * B:(t + 1) * B, :] + jnp.dot(
            h, whh, preferred_element_type=jnp.float32)           # (B, 4H)
        i_g = jax.nn.sigmoid(gates[:, 0 * H:1 * H])
        f_g = jax.nn.sigmoid(gates[:, 1 * H:2 * H])
        g_g = jnp.tanh(gates[:, 2 * H:3 * H])
        o_g = jax.nn.sigmoid(gates[:, 3 * H:4 * H])
        c = f_g * c + i_g * g_g
        h = o_g * jnp.tanh(c)

    # ---- FC head on the last hidden state; V padded to a lane multiple so the
    #      logits store is unmasked / lane-dense.
    logits_ref[...] = (jnp.dot(h, wfc_ref[...],
                               preferred_element_type=jnp.float32)
                       + bfc_ref[...])
    hn_ref[...] = h
    cn_ref[...] = c


def _run_lstm_kernel(tokens, emb, w_ih_t, w_hh_t, bias, w_fc_pad, b_fc_pad,
                     h0, c0):
    B, T = tokens.shape
    E = emb.shape[1]
    H = HIDDEN
    V_pad = w_fc_pad.shape[1]

    vmem = pl.BlockSpec(memory_space=pltpu.MemorySpace.VMEM)
    smem = pl.BlockSpec(memory_space=pltpu.MemorySpace.SMEM)

    return pl.pallas_call(
        _lstm_forward_kernel,
        out_shape=(jax.ShapeDtypeStruct((B, V_pad), jnp.float32),   # logits (padded)
                   jax.ShapeDtypeStruct((B, H), jnp.float32),       # h_n
                   jax.ShapeDtypeStruct((B, H), jnp.float32)),      # c_n
        in_specs=[smem,   # token ids (B, T) int32
                  vmem,   # embedding table (n_vocab, E)
                  vmem,   # W_ih^T (E, 4H)
                  vmem,   # W_hh^T (H, 4H)
                  vmem,   # b_ih + b_hh (1, 4H)
                  vmem,   # W_fc^T padded (H, V_pad)
                  vmem,   # b_fc padded (1, V_pad)
                  vmem,   # h0 (B, H)
                  vmem],  # c0 (B, H)
        out_specs=(vmem, vmem, vmem),
        scratch_shapes=[pltpu.VMEM((B * T, E), jnp.float32)],       # gathered x
    )(tokens, emb, w_ih_t, w_hh_t, bias, w_fc_pad, b_fc_pad, h0, c0)


def init_params(n_vocab, key):
    """Deterministic synthetic parameters matching the PyTorch module's shapes."""
    ks = jax.random.split(key, 7)
    scale = 0.1
    return {
        # nn.Embedding(n_vocab, 32)
        "embedding": scale * jax.random.normal(ks[0], (n_vocab, EMBED_DIM), jnp.float32),
        # nn.LSTM weights, stored pre-transposed: (E, 4H) / (H, 4H); gate order i,f,g,o
        "w_ih_t": scale * jax.random.normal(ks[1], (EMBED_DIM, 4 * HIDDEN), jnp.float32),
        "w_hh_t": scale * jax.random.normal(ks[2], (HIDDEN, 4 * HIDDEN), jnp.float32),
        "b_ih": scale * jax.random.normal(ks[3], (4 * HIDDEN,), jnp.float32),
        "b_hh": scale * jax.random.normal(ks[4], (4 * HIDDEN,), jnp.float32),
        # nn.Linear(32, n_vocab), stored pre-transposed: (H, V)
        "w_fc_t": scale * jax.random.normal(ks[5], (HIDDEN, n_vocab), jnp.float32),
        "b_fc": scale * jax.random.normal(ks[6], (n_vocab,), jnp.float32),
    }


def model_forward(x, params, randomize=False, state_key=None):
    """Mirrors Model.forward: returns (logits, (prev_state, state))."""
    B, T = x.shape

    if randomize:
        if state_key is None:
            state_key = jax.random.PRNGKey(0)
        k1, k2 = jax.random.split(state_key)
        h0 = jax.random.normal(k1, (NUM_LAYERS, B, HIDDEN), jnp.float32)
        c0 = jax.random.normal(k2, (NUM_LAYERS, B, HIDDEN), jnp.float32)
    else:
        h0 = jnp.zeros((NUM_LAYERS, B, HIDDEN), jnp.float32)
        c0 = jnp.zeros((NUM_LAYERS, B, HIDDEN), jnp.float32)
    prev_state = (h0, c0)

    V = params["w_fc_t"].shape[1]
    V_pad = ((V + LANE - 1) // LANE) * LANE
    w_fc_pad = jnp.pad(params["w_fc_t"], ((0, 0), (0, V_pad - V)))
    b_fc_pad = jnp.pad(params["b_fc"], (0, V_pad - V)).reshape(1, V_pad)
    bias = (params["b_ih"] + params["b_hh"]).reshape(1, 4 * HIDDEN)

    logits_pad, h_n, c_n = _run_lstm_kernel(
        x.astype(jnp.int32), params["embedding"], params["w_ih_t"],
        params["w_hh_t"], bias, w_fc_pad, b_fc_pad, h0[0], c0[0])

    # output[:, [-1], :] -> fc -> transpose(1,2)[:, :, 0]  ==  (B, n_vocab)
    logits = logits_pad[:, :V]
    state = (h_n[None, :, :], c_n[None, :, :])
    return logits, (prev_state, state)


def _reference_forward(x, params):
    """Pure-JAX reference of the same forward pass (for sanity checking)."""
    embed = jnp.take(params["embedding"], x, axis=0)
    B = x.shape[0]
    T = x.shape[1]
    h = jnp.zeros((B, HIDDEN), jnp.float32)
    c = jnp.zeros((B, HIDDEN), jnp.float32)
    bias = params["b_ih"] + params["b_hh"]
    for t in range(T):
        g = embed[:, t, :] @ params["w_ih_t"] + h @ params["w_hh_t"] + bias
        i = jax.nn.sigmoid(g[:, 0:HIDDEN])
        f = jax.nn.sigmoid(g[:, HIDDEN:2 * HIDDEN])
        gg = jnp.tanh(g[:, 2 * HIDDEN:3 * HIDDEN])
        o = jax.nn.sigmoid(g[:, 3 * HIDDEN:4 * HIDDEN])
        c = f * c + i * gg
        h = o * jnp.tanh(c)
    return h @ params["w_fc_t"] + params["b_fc"], h, c


if __name__ == "__main__":
    n_vocab = 40
    B, T = 2, 8

    key = jax.random.PRNGKey(0)
    k_params, k_tokens = jax.random.split(key)
    params = init_params(n_vocab, k_params)
    tokens = jax.random.randint(k_tokens, (B, T), 0, n_vocab, dtype=jnp.int32)

    logits, (prev_state, state) = model_forward(tokens, params, randomize=False)
    jax.block_until_ready(logits)
    jax.block_until_ready(state)

    assert logits.shape == (B, n_vocab)
    assert state[0].shape == (NUM_LAYERS, B, HIDDEN)
    assert state[1].shape == (NUM_LAYERS, B, HIDDEN)

    ref_logits, ref_h, ref_c = _reference_forward(tokens, params)
    assert jnp.allclose(logits, ref_logits, atol=1e-4, rtol=1e-4), "logits mismatch"
    assert jnp.allclose(state[0][0], ref_h, atol=1e-4, rtol=1e-4), "h_n mismatch"
    assert jnp.allclose(state[1][0], ref_c, atol=1e-4, rtol=1e-4), "c_n mismatch"

    print("KERNEL_OK")
</pallas_src>

<mosaic_0001>
module attributes {stable_mosaic.version = 11 : i64} {
  func.func @_lstm_forward_kernel(%arg0: memref<2x8xi32, #tpu.memory_space<smem>>, %arg1: memref<40x32xf32, #tpu.memory_space<vmem>>, %arg2: memref<32x128xf32, #tpu.memory_space<vmem>>, %arg3: memref<32x128xf32, #tpu.memory_space<vmem>>, %arg4: memref<1x128xf32, #tpu.memory_space<vmem>>, %arg5: memref<32x128xf32, #tpu.memory_space<vmem>>, %arg6: memref<1x128xf32, #tpu.memory_space<vmem>>, %arg7: memref<2x32xf32, #tpu.memory_space<vmem>>, %arg8: memref<2x32xf32, #tpu.memory_space<vmem>>, %arg9: memref<2x128xf32, #tpu.memory_space<vmem>>, %arg10: memref<2x32xf32, #tpu.memory_space<vmem>>, %arg11: memref<2x32xf32, #tpu.memory_space<vmem>>, %arg12: memref<16x32xf32, #tpu.memory_space<vmem>>) attributes {dimension_semantics = [], scalar_prefetch = 0 : i64, scratch_operands = 1 : i64, tpu.core_type = #tpu.core_type<tc>} {
    %c0 = arith.constant 0 : index
    %c0_0 = arith.constant 0 : index
    %0 = memref.load %arg0[%c0, %c0_0] : memref<2x8xi32, #tpu.memory_space<smem>>
    %1 = arith.index_cast %0 : i32 to index
    %c0_1 = arith.constant 0 : index
    %2 = vector.load %arg1[%1, %c0_1] : memref<40x32xf32, #tpu.memory_space<vmem>>, vector<1x32xf32>
    %c0_2 = arith.constant 0 : index
    %c0_3 = arith.constant 0 : index
    %3 = vector.load %arg12[%c0_2, %c0_3] : memref<16x32xf32, #tpu.memory_space<vmem>>, vector<1x32xf32>
    tpu.vector_store %arg12[%c0_2, %c0_3], %2 {strides = array<i32>} : memref<16x32xf32, #tpu.memory_space<vmem>>, vector<1x32xf32>,
    %c1 = arith.constant 1 : index
    %c0_4 = arith.constant 0 : index
    %4 = memref.load %arg0[%c1, %c0_4] : memref<2x8xi32, #tpu.memory_space<smem>>
    %5 = arith.index_cast %4 : i32 to index
    %c0_5 = arith.constant 0 : index
    %6 = vector.load %arg1[%5, %c0_5] : memref<40x32xf32, #tpu.memory_space<vmem>>, vector<1x32xf32>
    %c1_6 = arith.constant 1 : index
    %c0_7 = arith.constant 0 : index
    %7 = vector.load %arg12[%c1_6, %c0_7] : memref<16x32xf32, #tpu.memory_space<vmem>>, vector<1x32xf32>
    tpu.vector_store %arg12[%c1_6, %c0_7], %6 {strides = array<i32>} : memref<16x32xf32, #tpu.memory_space<vmem>>, vector<1x32xf32>,
    %c0_8 = arith.constant 0 : index
    %c1_9 = arith.constant 1 : index
    %8 = memref.load %arg0[%c0_8, %c1_9] : memref<2x8xi32, #tpu.memory_space<smem>>
    %9 = arith.index_cast %8 : i32 to index
    %c0_10 = arith.constant 0 : index
    %10 = vector.load %arg1[%9, %c0_10] : memref<40x32xf32, #tpu.memory_space<vmem>>, vector<1x32xf32>
    %c2 = arith.constant 2 : index
    %c0_11 = arith.constant 0 : index
    %11 = vector.load %arg12[%c2, %c0_11] : memref<16x32xf32, #tpu.memory_space<vmem>>, vector<1x32xf32>
    tpu.vector_store %arg12[%c2, %c0_11], %10 {strides = array<i32>} : memref<16x32xf32, #tpu.memory_space<vmem>>, vector<1x32xf32>,
    %c1_12 = arith.constant 1 : index
    %c1_13 = arith.constant 1 : index
    %12 = memref.load %arg0[%c1_12, %c1_13] : memref<2x8xi32, #tpu.memory_space<smem>>
    %13 = arith.index_cast %12 : i32 to index
    %c0_14 = arith.constant 0 : index
    %14 = vector.load %arg1[%13, %c0_14] : memref<40x32xf32, #tpu.memory_space<vmem>>, vector<1x32xf32>
    %c3 = arith.constant 3 : index
    %c0_15 = arith.constant 0 : index
    %15 = vector.load %arg12[%c3, %c0_15] : memref<16x32xf32, #tpu.memory_space<vmem>>, vector<1x32xf32>
    tpu.vector_store %arg12[%c3, %c0_15], %14 {strides = array<i32>} : memref<16x32xf32, #tpu.memory_space<vmem>>, vector<1x32xf32>,
    %c0_16 = arith.constant 0 : index
    %c2_17 = arith.constant 2 : index
    %16 = memref.load %arg0[%c0_16, %c2_17] : memref<2x8xi32, #tpu.memory_space<smem>>
    %17 = arith.index_cast %16 : i32 to index
    %c0_18 = arith.constant 0 : index
    %18 = vector.load %arg1[%17, %c0_18] : memref<40x32xf32, #tpu.memory_space<vmem>>, vector<1x32xf32>
    %c4 = arith.constant 4 : index
    %c0_19 = arith.constant 0 : index
    %19 = vector.load %arg12[%c4, %c0_19] : memref<16x32xf32, #tpu.memory_space<vmem>>, vector<1x32xf32>
    tpu.vector_store %arg12[%c4, %c0_19], %18 {strides = array<i32>} : memref<16x32xf32, #tpu.memory_space<vmem>>, vector<1x32xf32>,
    %c1_20 = arith.constant 1 : index
    %c2_21 = arith.constant 2 : index
    %20 = memref.load %arg0[%c1_20, %c2_21] : memref<2x8xi32, #tpu.memory_space<smem>>
    %21 = arith.index_cast %20 : i32 to index
    %c0_22 = arith.constant 0 : index
    %22 = vector.load %arg1[%21, %c0_22] : memref<40x32xf32, #tpu.memory_space<vmem>>, vector<1x32xf32>
    %c5 = arith.constant 5 : index
    %c0_23 = arith.constant 0 : index
    %23 = vector.load %arg12[%c5, %c0_23] : memref<16x32xf32, #tpu.memory_space<vmem>>, vector<1x32xf32>
    tpu.vector_store %arg12[%c5, %c0_23], %22 {strides = array<i32>} : memref<16x32xf32, #tpu.memory_space<vmem>>, vector<1x32xf32>,
    %c0_24 = arith.constant 0 : index
    %c3_25 = arith.constant 3 : index
    %24 = memref.load %arg0[%c0_24, %c3_25] : memref<2x8xi32, #tpu.memory_space<smem>>
    %25 = arith.index_cast %24 : i32 to index
    %c0_26 = arith.constant 0 : index
    %26 = vector.load %arg1[%25, %c0_26] : memref<40x32xf32, #tpu.memory_space<vmem>>, vector<1x32xf32>
    %c6 = arith.constant 6 : index
    %c0_27 = arith.constant 0 : index
    %27 = vector.load %arg12[%c6, %c0_27] : memref<16x32xf32, #tpu.memory_space<vmem>>, vector<1x32xf32>
    tpu.vector_store %arg12[%c6, %c0_27], %26 {strides = array<i32>} : memref<16x32xf32, #tpu.memory_space<vmem>>, vector<1x32xf32>,
    %c1_28 = arith.constant 1 : index
    %c3_29 = arith.constant 3 : index
    %28 = memref.load %arg0[%c1_28, %c3_29] : memref<2x8xi32, #tpu.memory_space<smem>>
    %29 = arith.index_cast %28 : i32 to index
    %c0_30 = arith.constant 0 : index
    %30 = vector.load %arg1[%29, %c0_30] : memref<40x32xf32, #tpu.memory_space<vmem>>, vector<1x32xf32>
    %c7 = arith.constant 7 : index
    %c0_31 = arith.constant 0 : index
    %31 = vector.load %arg12[%c7, %c0_31] : memref<16x32xf32, #tpu.memory_space<vmem>>, vector<1x32xf32>
    tpu.vector_store %arg12[%c7, %c0_31], %30 {strides = array<i32>} : memref<16x32xf32, #tpu.memory_space<vmem>>, vector<1x32xf32>,
    %c0_32 = arith.constant 0 : index
    %c4_33 = arith.constant 4 : index
    %32 = memref.load %arg0[%c0_32, %c4_33] : memref<2x8xi32, #tpu.memory_space<smem>>
    %33 = arith.index_cast %32 : i32 to index
    %c0_34 = arith.constant 0 : index
    %34 = vector.load %arg1[%33, %c0_34] : memref<40x32xf32, #tpu.memory_space<vmem>>, vector<1x32xf32>
    %c8 = arith.constant 8 : index
    %c0_35 = arith.constant 0 : index
    %35 = vector.load %arg12[%c8, %c0_35] : memref<16x32xf32, #tpu.memory_space<vmem>>, vector<1x32xf32>
    tpu.vector_store %arg12[%c8, %c0_35], %34 {strides = array<i32>} : memref<16x32xf32, #tpu.memory_space<vmem>>, vector<1x32xf32>,
    %c1_36 = arith.constant 1 : index
    %c4_37 = arith.constant 4 : index
    %36 = memref.load %arg0[%c1_36, %c4_37] : memref<2x8xi32, #tpu.memory_space<smem>>
    %37 = arith.index_cast %36 : i32 to index
    %c0_38 = arith.constant 0 : index
    %38 = vector.load %arg1[%37, %c0_38] : memref<40x32xf32, #tpu.memory_space<vmem>>, vector<1x32xf32>
    %c9 = arith.constant 9 : index
    %c0_39 = arith.constant 0 : index
    %39 = vector.load %arg12[%c9, %c0_39] : memref<16x32xf32, #tpu.memory_space<vmem>>, vector<1x32xf32>
    tpu.vector_store %arg12[%c9, %c0_39], %38 {strides = array<i32>} : memref<16x32xf32, #tpu.memory_space<vmem>>, vector<1x32xf32>,
    %c0_40 = arith.constant 0 : index
    %c5_41 = arith.constant 5 : index
    %40 = memref.load %arg0[%c0_40, %c5_41] : memref<2x8xi32, #tpu.memory_space<smem>>
    %41 = arith.index_cast %40 : i32 to index
    %c0_42 = arith.constant 0 : index
    %42 = vector.load %arg1[%41, %c0_42] : memref<40x32xf32, #tpu.memory_space<vmem>>, vector<1x32xf32>
    %c10 = arith.constant 10 : index
    %c0_43 = arith.constant 0 : index
    %43 = vector.load %arg12[%c10, %c0_43] : memref<16x32xf32, #tpu.memory_space<vmem>>, vector<1x32xf32>
    tpu.vector_store %arg12[%c10, %c0_43], %42 {strides = array<i32>} : memref<16x32xf32, #tpu.memory_space<vmem>>, vector<1x32xf32>,
    %c1_44 = arith.constant 1 : index
    %c5_45 = arith.constant 5 : index
    %44 = memref.load %arg0[%c1_44, %c5_45] : memref<2x8xi32, #tpu.memory_space<smem>>
    %45 = arith.index_cast %44 : i32 to index
    %c0_46 = arith.constant 0 : index
    %46 = vector.load %arg1[%45, %c0_46] : memref<40x32xf32, #tpu.memory_space<vmem>>, vector<1x32xf32>
    %c11 = arith.constant 11 : index
    %c0_47 = arith.constant 0 : index
    %47 = vector.load %arg12[%c11, %c0_47] : memref<16x32xf32, #tpu.memory_space<vmem>>, vector<1x32xf32>
    tpu.vector_store %arg12[%c11, %c0_47], %46 {strides = array<i32>} : memref<16x32xf32, #tpu.memory_space<vmem>>, vector<1x32xf32>,
    %c0_48 = arith.constant 0 : index
    %c6_49 = arith.constant 6 : index
    %48 = memref.load %arg0[%c0_48, %c6_49] : memref<2x8xi32, #tpu.memory_space<smem>>
    %49 = arith.index_cast %48 : i32 to index
    %c0_50 = arith.constant 0 : index
    %50 = vector.load %arg1[%49, %c0_50] : memref<40x32xf32, #tpu.memory_space<vmem>>, vector<1x32xf32>
    %c12 = arith.constant 12 : index
    %c0_51 = arith.constant 0 : index
    %51 = vector.load %arg12[%c12, %c0_51] : memref<16x32xf32, #tpu.memory_space<vmem>>, vector<1x32xf32>
    tpu.vector_store %arg12[%c12, %c0_51], %50 {strides = array<i32>} : memref<16x32xf32, #tpu.memory_space<vmem>>, vector<1x32xf32>,
    %c1_52 = arith.constant 1 : index
    %c6_53 = arith.constant 6 : index
    %52 = memref.load %arg0[%c1_52, %c6_53] : memref<2x8xi32, #tpu.memory_space<smem>>
    %53 = arith.index_cast %52 : i32 to index
    %c0_54 = arith.constant 0 : index
    %54 = vector.load %arg1[%53, %c0_54] : memref<40x32xf32, #tpu.memory_space<vmem>>, vector<1x32xf32>
    %c13 = arith.constant 13 : index
    %c0_55 = arith.constant 0 : index
    %55 = vector.load %arg12[%c13, %c0_55] : memref<16x32xf32, #tpu.memory_space<vmem>>, vector<1x32xf32>
    tpu.vector_store %arg12[%c13, %c0_55], %54 {strides = array<i32>} : memref<16x32xf32, #tpu.memory_space<vmem>>, vector<1x32xf32>,
    %c0_56 = arith.constant 0 : index
    %c7_57 = arith.constant 7 : index
    %56 = memref.load %arg0[%c0_56, %c7_57] : memref<2x8xi32, #tpu.memory_space<smem>>
    %57 = arith.index_cast %56 : i32 to index
    %c0_58 = arith.constant 0 : index
    %58 = vector.load %arg1[%57, %c0_58] : memref<40x32xf32, #tpu.memory_space<vmem>>, vector<1x32xf32>
    %c14 = arith.constant 14 : index
    %c0_59 = arith.constant 0 : index
    %59 = vector.load %arg12[%c14, %c0_59] : memref<16x32xf32, #tpu.memory_space<vmem>>, vector<1x32xf32>
    tpu.vector_store %arg12[%c14, %c0_59], %58 {strides = array<i32>} : memref<16x32xf32, #tpu.memory_space<vmem>>, vector<1x32xf32>,
    %c1_60 = arith.constant 1 : index
    %c7_61 = arith.constant 7 : index
    %60 = memref.load %arg0[%c1_60, %c7_61] : memref<2x8xi32, #tpu.memory_space<smem>>
    %61 = arith.index_cast %60 : i32 to index
    %c0_62 = arith.constant 0 : index
    %62 = vector.load %arg1[%61, %c0_62] : memref<40x32xf32, #tpu.memory_space<vmem>>, vector<1x32xf32>
    %c15 = arith.constant 15 : index
    %c0_63 = arith.constant 0 : index
    %63 = vector.load %arg12[%c15, %c0_63] : memref<16x32xf32, #tpu.memory_space<vmem>>, vector<1x32xf32>
    tpu.vector_store %arg12[%c15, %c0_63], %62 {strides = array<i32>} : memref<16x32xf32, #tpu.memory_space<vmem>>, vector<1x32xf32>,
    %c0_64 = arith.constant 0 : index
    %c0_65 = arith.constant 0 : index
    %64 = vector.load %arg12[%c0_64, %c0_65] : memref<16x32xf32, #tpu.memory_space<vmem>>, vector<16x32xf32>
    %c0_66 = arith.constant 0 : index
    %c0_67 = arith.constant 0 : index
    %65 = vector.load %arg2[%c0_66, %c0_67] : memref<32x128xf32, #tpu.memory_space<vmem>>, vector<32x128xf32>
    %cst = arith.constant dense<0.000000e+00> : vector<16x128xf32>
    %66 = tpu.matmul %64, %65, %cst {dimension_numbers = #tpu.dot_dimension_numbers<[1], [0], [0], [1], [0, 0, 1, 1], [], []>} : vector<16x32xf32>, vector<32x128xf32>, vector<16x128xf32> -> vector<16x128xf32>
    %c0_68 = arith.constant 0 : index
    %c0_69 = arith.constant 0 : index
    %67 = vector.load %arg4[%c0_68, %c0_69] : memref<1x128xf32, #tpu.memory_space<vmem>>, vector<1x128xf32>
    %68 = vector.broadcast %67 : vector<1x128xf32> to vector<16x128xf32>
    %69 = arith.addf %66, %68 : vector<16x128xf32>
    %c0_70 = arith.constant 0 : index
    %c0_71 = arith.constant 0 : index
    %70 = vector.load %arg3[%c0_70, %c0_71] : memref<32x128xf32, #tpu.memory_space<vmem>>, vector<32x128xf32>
    %c0_72 = arith.constant 0 : index
    %c0_73 = arith.constant 0 : index
    %71 = vector.load %arg7[%c0_72, %c0_73] : memref<2x32xf32, #tpu.memory_space<vmem>>, vector<2x32xf32>
    %c0_74 = arith.constant 0 : index
    %c0_75 = arith.constant 0 : index
    %72 = vector.load %arg8[%c0_74, %c0_75] : memref<2x32xf32, #tpu.memory_space<vmem>>, vector<2x32xf32>
    %73 = vector.extract_strided_slice %69 {offsets = [0, 0], sizes = [2, 128], strides = [1, 1]} : vector<16x128xf32> to vector<2x128xf32>
    %cst_76 = arith.constant dense<0.000000e+00> : vector<2x128xf32>
    %74 = tpu.matmul %71, %70, %cst_76 {dimension_numbers = #tpu.dot_dimension_numbers<[1], [0], [0], [1], [0, 0, 1, 1], [], []>} : vector<2x32xf32>, vector<32x128xf32>, vector<2x128xf32> -> vector<2x128xf32>
    %75 = arith.addf %73, %74 : vector<2x128xf32>
    %76 = vector.extract_strided_slice %75 {offsets = [0, 0], sizes = [2, 32], strides = [1, 1]} : vector<2x128xf32> to vector<2x32xf32>
    %77 = arith.negf %76 : vector<2x32xf32>
    %78 = math.exp %77 : vector<2x32xf32>
    %cst_77 = arith.constant 1.000000e+00 : f32
    %79 = vector.broadcast %cst_77 : f32 to vector<2x32xf32>
    %80 = arith.addf %79, %78 : vector<2x32xf32>
    %81 = arith.divf %79, %80 : vector<2x32xf32>
    %82 = vector.extract_strided_slice %75 {offsets = [0, 32], sizes = [2, 32], strides = [1, 1]} : vector<2x128xf32> to vector<2x32xf32>
    %83 = arith.negf %82 : vector<2x32xf32>
    %84 = math.exp %83 : vector<2x32xf32>
    %cst_78 = arith.constant 1.000000e+00 : f32
    %85 = vector.broadcast %cst_78 : f32 to vector<2x32xf32>
    %86 = arith.addf %85, %84 : vector<2x32xf32>
    %87 = arith.divf %85, %86 : vector<2x32xf32>
    %88 = vector.extract_strided_slice %75 {offsets = [0, 64], sizes = [2, 32], strides = [1, 1]} : vector<2x128xf32> to vector<2x32xf32>
    %89 = math.tanh %88 : vector<2x32xf32>
    %90 = vector.extract_strided_slice %75 {offsets = [0, 96], sizes = [2, 32], strides = [1, 1]} : vector<2x128xf32> to vector<2x32xf32>
    %91 = arith.negf %90 : vector<2x32xf32>
    %92 = math.exp %91 : vector<2x32xf32>
    %cst_79 = arith.constant 1.000000e+00 : f32
    %93 = vector.broadcast %cst_79 : f32 to vector<2x32xf32>
    %94 = arith.addf %93, %92 : vector<2x32xf32>
    %95 = arith.divf %93, %94 : vector<2x32xf32>
    %96 = arith.mulf %87, %72 : vector<2x32xf32>
    %97 = arith.mulf %81, %89 : vector<2x32xf32>
    %98 = arith.addf %96, %97 : vector<2x32xf32>
    %99 = math.tanh %98 : vector<2x32xf32>
    %100 = arith.mulf %95, %99 : vector<2x32xf32>
    %101 = vector.extract_strided_slice %69 {offsets = [2, 0], sizes = [2, 128], strides = [1, 1]} : vector<16x128xf32> to vector<2x128xf32>
    %cst_80 = arith.constant dense<0.000000e+00> : vector<2x128xf32>
    %102 = tpu.matmul %100, %70, %cst_80 {dimension_numbers = #tpu.dot_dimension_numbers<[1], [0], [0], [1], [0, 0, 1, 1], [], []>} : vector<2x32xf32>, vector<32x128xf32>, vector<2x128xf32> -> vector<2x128xf32>
    %103 = arith.addf %101, %102 : vector<2x128xf32>
    %104 = vector.extract_strided_slice %103 {offsets = [0, 0], sizes = [2, 32], strides = [1, 1]} : vector<2x128xf32> to vector<2x32xf32>
    %105 = arith.negf %104 : vector<2x32xf32>
    %106 = math.exp %105 : vector<2x32xf32>
    %cst_81 = arith.constant 1.000000e+00 : f32
    %107 = vector.broadcast %cst_81 : f32 to vector<2x32xf32>
    %108 = arith.addf %107, %106 : vector<2x32xf32>
    %109 = arith.divf %107, %108 : vector<2x32xf32>
    %110 = vector.extract_strided_slice %103 {offsets = [0, 32], sizes = [2, 32], strides = [1, 1]} : vector<2x128xf32> to vector<2x32xf32>
    %111 = arith.negf %110 : vector<2x32xf32>
    %112 = math.exp %111 : vector<2x32xf32>
    %cst_82 = arith.constant 1.000000e+00 : f32
    %113 = vector.broadcast %cst_82 : f32 to vector<2x32xf32>
    %114 = arith.addf %113, %112 : vector<2x32xf32>
    %115 = arith.divf %113, %114 : vector<2x32xf32>
    %116 = vector.extract_strided_slice %103 {offsets = [0, 64], sizes = [2, 32], strides = [1, 1]} : vector<2x128xf32> to vector<2x32xf32>
    %117 = math.tanh %116 : vector<2x32xf32>
    %118 = vector.extract_strided_slice %103 {offsets = [0, 96], sizes = [2, 32], strides = [1, 1]} : vector<2x128xf32> to vector<2x32xf32>
    %119 = arith.negf %118 : vector<2x32xf32>
    %120 = math.exp %119 : vector<2x32xf32>
    %cst_83 = arith.constant 1.000000e+00 : f32
    %121 = vector.broadcast %cst_83 : f32 to vector<2x32xf32>
    %122 = arith.addf %121, %120 : vector<2x32xf32>
    %123 = arith.divf %121, %122 : vector<2x32xf32>
    %124 = arith.mulf %115, %98 : vector<2x32xf32>
    %125 = arith.mulf %109, %117 : vector<2x32xf32>
    %126 = arith.addf %124, %125 : vector<2x32xf32>
    %127 = math.tanh %126 : vector<2x32xf32>
    %128 = arith.mulf %123, %127 : vector<2x32xf32>
    %129 = vector.extract_strided_slice %69 {offsets = [4, 0], sizes = [2, 128], strides = [1, 1]} : vector<16x128xf32> to vector<2x128xf32>
    %cst_84 = arith.constant dense<0.000000e+00> : vector<2x128xf32>
    %130 = tpu.matmul %128, %70, %cst_84 {dimension_numbers = #tpu.dot_dimension_numbers<[1], [0], [0], [1], [0, 0, 1, 1], [], []>} : vector<2x32xf32>, vector<32x128xf32>, vector<2x128xf32> -> vector<2x128xf32>
    %131 = arith.addf %129, %130 : vector<2x128xf32>
    %132 = vector.extract_strided_slice %131 {offsets = [0, 0], sizes = [2, 32], strides = [1, 1]} : vector<2x128xf32> to vector<2x32xf32>
    %133 = arith.negf %132 : vector<2x32xf32>
    %134 = math.exp %133 : vector<2x32xf32>
    %cst_85 = arith.constant 1.000000e+00 : f32
    %135 = vector.broadcast %cst_85 : f32 to vector<2x32xf32>
    %136 = arith.addf %135, %134 : vector<2x32xf32>
    %137 = arith.divf %135, %136 : vector<2x32xf32>
    %138 = vector.extract_strided_slice %131 {offsets = [0, 32], sizes = [2, 32], strides = [1, 1]} : vector<2x128xf32> to vector<2x32xf32>
    %139 = arith.negf %138 : vector<2x32xf32>
    %140 = math.exp %139 : vector<2x32xf32>
    %cst_86 = arith.constant 1.000000e+00 : f32
    %141 = vector.broadcast %cst_86 : f32 to vector<2x32xf32>
    %142 = arith.addf %141, %140 : vector<2x32xf32>
    %143 = arith.divf %141, %142 : vector<2x32xf32>
    %144 = vector.extract_strided_slice %131 {offsets = [0, 64], sizes = [2, 32], strides = [1, 1]} : vector<2x128xf32> to vector<2x32xf32>
    %145 = math.tanh %144 : vector<2x32xf32>
    %146 = vector.extract_strided_slice %131 {offsets = [0, 96], sizes = [2, 32], strides = [1, 1]} : vector<2x128xf32> to vector<2x32xf32>
    %147 = arith.negf %146 : vector<2x32xf32>
    %148 = math.exp %147 : vector<2x32xf32>
    %cst_87 = arith.constant 1.000000e+00 : f32
    %149 = vector.broadcast %cst_87 : f32 to vector<2x32xf32>
    %150 = arith.addf %149, %148 : vector<2x32xf32>
    %151 = arith.divf %149, %150 : vector<2x32xf32>
    %152 = arith.mulf %143, %126 : vector<2x32xf32>
    %153 = arith.mulf %137, %145 : vector<2x32xf32>
    %154 = arith.addf %152, %153 : vector<2x32xf32>
    %155 = math.tanh %154 : vector<2x32xf32>
    %156 = arith.mulf %151, %155 : vector<2x32xf32>
    %157 = vector.extract_strided_slice %69 {offsets = [6, 0], sizes = [2, 128], strides = [1, 1]} : vector<16x128xf32> to vector<2x128xf32>
    %cst_88 = arith.constant dense<0.000000e+00> : vector<2x128xf32>
    %158 = tpu.matmul %156, %70, %cst_88 {dimension_numbers = #tpu.dot_dimension_numbers<[1], [0], [0], [1], [0, 0, 1, 1], [], []>} : vector<2x32xf32>, vector<32x128xf32>, vector<2x128xf32> -> vector<2x128xf32>
    %159 = arith.addf %157, %158 : vector<2x128xf32>
    %160 = vector.extract_strided_slice %159 {offsets = [0, 0], sizes = [2, 32], strides = [1, 1]} : vector<2x128xf32> to vector<2x32xf32>
    %161 = arith.negf %160 : vector<2x32xf32>
    %162 = math.exp %161 : vector<2x32xf32>
    %cst_89 = arith.constant 1.000000e+00 : f32
    %163 = vector.broadcast %cst_89 : f32 to vector<2x32xf32>
    %164 = arith.addf %163, %162 : vector<2x32xf32>
    %165 = arith.divf %163, %164 : vector<2x32xf32>
    %166 = vector.extract_strided_slice %159 {offsets = [0, 32], sizes = [2, 32], strides = [1, 1]} : vector<2x128xf32> to vector<2x32xf32>
    %167 = arith.negf %166 : vector<2x32xf32>
    %168 = math.exp %167 : vector<2x32xf32>
    %cst_90 = arith.constant 1.000000e+00 : f32
    %169 = vector.broadcast %cst_90 : f32 to vector<2x32xf32>
    %170 = arith.addf %169, %168 : vector<2x32xf32>
    %171 = arith.divf %169, %170 : vector<2x32xf32>
    %172 = vector.extract_strided_slice %159 {offsets = [0, 64], sizes = [2, 32], strides = [1, 1]} : vector<2x128xf32> to vector<2x32xf32>
    %173 = math.tanh %172 : vector<2x32xf32>
    %174 = vector.extract_strided_slice %159 {offsets = [0, 96], sizes = [2, 32], strides = [1, 1]} : vector<2x128xf32> to vector<2x32xf32>
    %175 = arith.negf %174 : vector<2x32xf32>
    %176 = math.exp %175 : vector<2x32xf32>
    %cst_91 = arith.constant 1.000000e+00 : f32
    %177 = vector.broadcast %cst_91 : f32 to vector<2x32xf32>
    %178 = arith.addf %177, %176 : vector<2x32xf32>
    %179 = arith.divf %177, %178 : vector<2x32xf32>
    %180 = arith.mulf %171, %154 : vector<2x32xf32>
    %181 = arith.mulf %165, %173 : vector<2x32xf32>
    %182 = arith.addf %180, %181 : vector<2x32xf32>
    %183 = math.tanh %182 : vector<2x32xf32>
    %184 = arith.mulf %179, %183 : vector<2x32xf32>
    %185 = vector.extract_strided_slice %69 {offsets = [8, 0], sizes = [2, 128], strides = [1, 1]} : vector<16x128xf32> to vector<2x128xf32>
    %cst_92 = arith.constant dense<0.000000e+00> : vector<2x128xf32>
    %186 = tpu.matmul %184, %70, %cst_92 {dimension_numbers = #tpu.dot_dimension_numbers<[1], [0], [0], [1], [0, 0, 1, 1], [], []>} : vector<2x32xf32>, vector<32x128xf32>, vector<2x128xf32> -> vector<2x128xf32>
    %187 = arith.addf %185, %186 : vector<2x128xf32>
    %188 = vector.extract_strided_slice %187 {offsets = [0, 0], sizes = [2, 32], strides = [1, 1]} : vector<2x128xf32> to vector<2x32xf32>
    %189 = arith.negf %188 : vector<2x32xf32>
    %190 = math.exp %189 : vector<2x32xf32>
    %cst_93 = arith.constant 1.000000e+00 : f32
    %191 = vector.broadcast %cst_93 : f32 to vector<2x32xf32>
    %192 = arith.addf %191, %190 : vector<2x32xf32>
    %193 = arith.divf %191, %192 : vector<2x32xf32>
    %194 = vector.extract_strided_slice %187 {offsets = [0, 32], sizes = [2, 32], strides = [1, 1]} : vector<2x128xf32> to vector<2x32xf32>
    %195 = arith.negf %194 : vector<2x32xf32>
    %196 = math.exp %195 : vector<2x32xf32>
    %cst_94 = arith.constant 1.000000e+00 : f32
    %197 = vector.broadcast %cst_94 : f32 to vector<2x32xf32>
    %198 = arith.addf %197, %196 : vector<2x32xf32>
    %199 = arith.divf %197, %198 : vector<2x32xf32>
    %200 = vector.extract_strided_slice %187 {offsets = [0, 64], sizes = [2, 32], strides = [1, 1]} : vector<2x128xf32> to vector<2x32xf32>
    %201 = math.tanh %200 : vector<2x32xf32>
    %202 = vector.extract_strided_slice %187 {offsets = [0, 96], sizes = [2, 32], strides = [1, 1]} : vector<2x128xf32> to vector<2x32xf32>
    %203 = arith.negf %202 : vector<2x32xf32>
    %204 = math.exp %203 : vector<2x32xf32>
    %cst_95 = arith.constant 1.000000e+00 : f32
    %205 = vector.broadcast %cst_95 : f32 to vector<2x32xf32>
    %206 = arith.addf %205, %204 : vector<2x32xf32>
    %207 = arith.divf %205, %206 : vector<2x32xf32>
    %208 = arith.mulf %199, %182 : vector<2x32xf32>
    %209 = arith.mulf %193, %201 : vector<2x32xf32>
    %210 = arith.addf %208, %209 : vector<2x32xf32>
    %211 = math.tanh %210 : vector<2x32xf32>
    %212 = arith.mulf %207, %211 : vector<2x32xf32>
    %213 = vector.extract_strided_slice %69 {offsets = [10, 0], sizes = [2, 128], strides = [1, 1]} : vector<16x128xf32> to vector<2x128xf32>
    %cst_96 = arith.constant dense<0.000000e+00> : vector<2x128xf32>
    %214 = tpu.matmul %212, %70, %cst_96 {dimension_numbers = #tpu.dot_dimension_numbers<[1], [0], [0], [1], [0, 0, 1, 1], [], []>} : vector<2x32xf32>, vector<32x128xf32>, vector<2x128xf32> -> vector<2x128xf32>
    %215 = arith.addf %213, %214 : vector<2x128xf32>
    %216 = vector.extract_strided_slice %215 {offsets = [0, 0], sizes = [2, 32], strides = [1, 1]} : vector<2x128xf32> to vector<2x32xf32>
    %217 = arith.negf %216 : vector<2x32xf32>
    %218 = math.exp %217 : vector<2x32xf32>
    %cst_97 = arith.constant 1.000000e+00 : f32
    %219 = vector.broadcast %cst_97 : f32 to vector<2x32xf32>
    %220 = arith.addf %219, %218 : vector<2x32xf32>
    %221 = arith.divf %219, %220 : vector<2x32xf32>
    %222 = vector.extract_strided_slice %215 {offsets = [0, 32], sizes = [2, 32], strides = [1, 1]} : vector<2x128xf32> to vector<2x32xf32>
    %223 = arith.negf %222 : vector<2x32xf32>
    %224 = math.exp %223 : vector<2x32xf32>
    %cst_98 = arith.constant 1.000000e+00 : f32
    %225 = vector.broadcast %cst_98 : f32 to vector<2x32xf32>
    %226 = arith.addf %225, %224 : vector<2x32xf32>
    %227 = arith.divf %225, %226 : vector<2x32xf32>
    %228 = vector.extract_strided_slice %215 {offsets = [0, 64], sizes = [2, 32], strides = [1, 1]} : vector<2x128xf32> to vector<2x32xf32>
    %229 = math.tanh %228 : vector<2x32xf32>
    %230 = vector.extract_strided_slice %215 {offsets = [0, 96], sizes = [2, 32], strides = [1, 1]} : vector<2x128xf32> to vector<2x32xf32>
    %231 = arith.negf %230 : vector<2x32xf32>
    %232 = math.exp %231 : vector<2x32xf32>
    %cst_99 = arith.constant 1.000000e+00 : f32
    %233 = vector.broadcast %cst_99 : f32 to vector<2x32xf32>
    %234 = arith.addf %233, %232 : vector<2x32xf32>
    %235 = arith.divf %233, %234 : vector<2x32xf32>
    %236 = arith.mulf %227, %210 : vector<2x32xf32>
    %237 = arith.mulf %221, %229 : vector<2x32xf32>
    %238 = arith.addf %236, %237 : vector<2x32xf32>
    %239 = math.tanh %238 : vector<2x32xf32>
    %240 = arith.mulf %235, %239 : vector<2x32xf32>
    %241 = vector.extract_strided_slice %69 {offsets = [12, 0], sizes = [2, 128], strides = [1, 1]} : vector<16x128xf32> to vector<2x128xf32>
    %cst_100 = arith.constant dense<0.000000e+00> : vector<2x128xf32>
    %242 = tpu.matmul %240, %70, %cst_100 {dimension_numbers = #tpu.dot_dimension_numbers<[1], [0], [0], [1], [0, 0, 1, 1], [], []>} : vector<2x32xf32>, vector<32x128xf32>, vector<2x128xf32> -> vector<2x128xf32>
    %243 = arith.addf %241, %242 : vector<2x128xf32>
    %244 = vector.extract_strided_slice %243 {offsets = [0, 0], sizes = [2, 32], strides = [1, 1]} : vector<2x128xf32> to vector<2x32xf32>
    %245 = arith.negf %244 : vector<2x32xf32>
    %246 = math.exp %245 : vector<2x32xf32>
    %cst_101 = arith.constant 1.000000e+00 : f32
    %247 = vector.broadcast %cst_101 : f32 to vector<2x32xf32>
    %248 = arith.addf %247, %246 : vector<2x32xf32>
    %249 = arith.divf %247, %248 : vector<2x32xf32>
    %250 = vector.extract_strided_slice %243 {offsets = [0, 32], sizes = [2, 32], strides = [1, 1]} : vector<2x128xf32> to vector<2x32xf32>
    %251 = arith.negf %250 : vector<2x32xf32>
    %252 = math.exp %251 : vector<2x32xf32>
    %cst_102 = arith.constant 1.000000e+00 : f32
    %253 = vector.broadcast %cst_102 : f32 to vector<2x32xf32>
    %254 = arith.addf %253, %252 : vector<2x32xf32>
    %255 = arith.divf %253, %254 : vector<2x32xf32>
    %256 = vector.extract_strided_slice %243 {offsets = [0, 64], sizes = [2, 32], strides = [1, 1]} : vector<2x128xf32> to vector<2x32xf32>
    %257 = math.tanh %256 : vector<2x32xf32>
    %258 = vector.extract_strided_slice %243 {offsets = [0, 96], sizes = [2, 32], strides = [1, 1]} : vector<2x128xf32> to vector<2x32xf32>
    %259 = arith.negf %258 : vector<2x32xf32>
    %260 = math.exp %259 : vector<2x32xf32>
    %cst_103 = arith.constant 1.000000e+00 : f32
    %261 = vector.broadcast %cst_103 : f32 to vector<2x32xf32>
    %262 = arith.addf %261, %260 : vector<2x32xf32>
    %263 = arith.divf %261, %262 : vector<2x32xf32>
    %264 = arith.mulf %255, %238 : vector<2x32xf32>
    %265 = arith.mulf %249, %257 : vector<2x32xf32>
    %266 = arith.addf %264, %265 : vector<2x32xf32>
    %267 = math.tanh %266 : vector<2x32xf32>
    %268 = arith.mulf %263, %267 : vector<2x32xf32>
    %269 = vector.extract_strided_slice %69 {offsets = [14, 0], sizes = [2, 128], strides = [1, 1]} : vector<16x128xf32> to vector<2x128xf32>
    %cst_104 = arith.constant dense<0.000000e+00> : vector<2x128xf32>
    %270 = tpu.matmul %268, %70, %cst_104 {dimension_numbers = #tpu.dot_dimension_numbers<[1], [0], [0], [1], [0, 0, 1, 1], [], []>} : vector<2x32xf32>, vector<32x128xf32>, vector<2x128xf32> -> vector<2x128xf32>
    %271 = arith.addf %269, %270 : vector<2x128xf32>
    %272 = vector.extract_strided_slice %271 {offsets = [0, 0], sizes = [2, 32], strides = [1, 1]} : vector<2x128xf32> to vector<2x32xf32>
    %273 = arith.negf %272 : vector<2x32xf32>
    %274 = math.exp %273 : vector<2x32xf32>
    %cst_105 = arith.constant 1.000000e+00 : f32
    %275 = vector.broadcast %cst_105 : f32 to vector<2x32xf32>
    %276 = arith.addf %275, %274 : vector<2x32xf32>
    %277 = arith.divf %275, %276 : vector<2x32xf32>
    %278 = vector.extract_strided_slice %271 {offsets = [0, 32], sizes = [2, 32], strides = [1, 1]} : vector<2x128xf32> to vector<2x32xf32>
    %279 = arith.negf %278 : vector<2x32xf32>
    %280 = math.exp %279 : vector<2x32xf32>
    %cst_106 = arith.constant 1.000000e+00 : f32
    %281 = vector.broadcast %cst_106 : f32 to vector<2x32xf32>
    %282 = arith.addf %281, %280 : vector<2x32xf32>
    %283 = arith.divf %281, %282 : vector<2x32xf32>
    %284 = vector.extract_strided_slice %271 {offsets = [0, 64], sizes = [2, 32], strides = [1, 1]} : vector<2x128xf32> to vector<2x32xf32>
    %285 = math.tanh %284 : vector<2x32xf32>
    %286 = vector.extract_strided_slice %271 {offsets = [0, 96], sizes = [2, 32], strides = [1, 1]} : vector<2x128xf32> to vector<2x32xf32>
    %287 = arith.negf %286 : vector<2x32xf32>
    %288 = math.exp %287 : vector<2x32xf32>
    %cst_107 = arith.constant 1.000000e+00 : f32
    %289 = vector.broadcast %cst_107 : f32 to vector<2x32xf32>
    %290 = arith.addf %289, %288 : vector<2x32xf32>
    %291 = arith.divf %289, %290 : vector<2x32xf32>
    %292 = arith.mulf %283, %266 : vector<2x32xf32>
    %293 = arith.mulf %277, %285 : vector<2x32xf32>
    %294 = arith.addf %292, %293 : vector<2x32xf32>
    %295 = math.tanh %294 : vector<2x32xf32>
    %296 = arith.mulf %291, %295 : vector<2x32xf32>
    %c0_108 = arith.constant 0 : index
    %c0_109 = arith.constant 0 : index
    %297 = vector.load %arg5[%c0_108, %c0_109] : memref<32x128xf32, #tpu.memory_space<vmem>>, vector<32x128xf32>
    %cst_110 = arith.constant dense<0.000000e+00> : vector<2x128xf32>
    %298 = tpu.matmul %296, %297, %cst_110 {dimension_numbers = #tpu.dot_dimension_numbers<[1], [0], [0], [1], [0, 0, 1, 1], [], []>} : vector<2x32xf32>, vector<32x128xf32>, vector<2x128xf32> -> vector<2x128xf32>
    %c0_111 = arith.constant 0 : index
    %c0_112 = arith.constant 0 : index
    %299 = vector.load %arg6[%c0_111, %c0_112] : memref<1x128xf32, #tpu.memory_space<vmem>>, vector<1x128xf32>
    %300 = vector.broadcast %299 : vector<1x128xf32> to vector<2x128xf32>
    %301 = arith.addf %298, %300 : vector<2x128xf32>
    %c0_113 = arith.constant 0 : index
    %c0_114 = arith.constant 0 : index
    %302 = vector.load %arg9[%c0_113, %c0_114] : memref<2x128xf32, #tpu.memory_space<vmem>>, vector<2x128xf32>
    tpu.vector_store %arg9[%c0_113, %c0_114], %301 {strides = array<i32>} : memref<2x128xf32, #tpu.memory_space<vmem>>, vector<2x128xf32>,
    %c0_115 = arith.constant 0 : index
    %c0_116 = arith.constant 0 : index
    %303 = vector.load %arg10[%c0_115, %c0_116] : memref<2x32xf32, #tpu.memory_space<vmem>>, vector<2x32xf32>
    tpu.vector_store %arg10[%c0_115, %c0_116], %296 {strides = array<i32>} : memref<2x32xf32, #tpu.memory_space<vmem>>, vector<2x32xf32>,
    %c0_117 = arith.constant 0 : index
    %c0_118 = arith.constant 0 : index
    %304 = vector.load %arg11[%c0_117, %c0_118] : memref<2x32xf32, #tpu.memory_space<vmem>>, vector<2x32xf32>
    tpu.vector_store %arg11[%c0_117, %c0_118], %294 {strides = array<i32>} : memref<2x32xf32, #tpu.memory_space<vmem>>, vector<2x32xf32>,
    return
  }
}

</mosaic_0001>

<llo_original>
// kernel: tpu_custom_call.1
$region0: #{tpu_custom_call.1}
  #allocation0 [shape = 'u32[]', space=smem, size = 0x4, offset = 0x4, fixed_abs, tag = 'smem constant byte address 0x4 - core index']
  #allocation1 [shape = 'u32[144,128]{1,0:T(1,128)}', space=vmem, size = 0x12000, scoped, tag = 'internal scratch']
  #allocation2 [shape = 'f32[16,32]{1,0:T(8,128)}', space=vmem, size = 0x2000, scoped, tag = 'scratch operand']
  %s0 = inlined_call_operand.vmem [shape: s32[2,8], index: 0, kind: input, shape index: {}]
  %s1 = inlined_call_operand.vmem [shape: f32[40,32], index: 1, kind: input, shape index: {}]
  %s2 = inlined_call_operand.vmem [shape: f32[32,128], index: 2, kind: input, shape index: {}]
  %s3 = inlined_call_operand.vmem [shape: f32[32,128], index: 3, kind: input, shape index: {}]
  %s4 = inlined_call_operand.vmem [shape: f32[1,128], index: 4, kind: input, shape index: {}]
  %s5 = inlined_call_operand.hbm [shape: f32[32,128], index: 5, kind: input, shape index: {}]
  %s6 = inlined_call_operand.vmem [shape: f32[1,128], index: 6, kind: input, shape index: {}]
  %s7 = inlined_call_operand.vmem [shape: f32[2,32], index: 7, kind: input, shape index: {}]
  %s8 = inlined_call_operand.vmem [shape: f32[2,32], index: 8, kind: input, shape index: {}]
  %s9 = inlined_call_operand.hbm [shape: f32[2,128], index: 9, kind: output, shape index: {0}]
  %s10 = inlined_call_operand.hbm [shape: f32[2,32], index: 10, kind: output, shape index: {1}]
  %s11 = inlined_call_operand.hbm [shape: f32[2,32], index: 11, kind: output, shape index: {2}]
  %12 = xla_tuple %s9, %s10, %s11
  %s13 = sld [smem:[#allocation0]]
  $region70: #{tpu_custom_call.1} parent=0
    _
  %s15 = ssub.s32 1, %s13
  %s16 = scalar_select 0, %s15, %s13
  $region1: #{tpu_custom_call.1} parent=0
    #allocation3 [shape = 'u8[1024]{0}', space=smem, size = 0x400, scoped, tag = 'input window, operand 0, single buffered']
    #allocation4 [shape = 's32[1]{0}', space=sflag, size = 0x4, scoped, tag = 'scoped memory for tpu_custom_call.1']
    #allocation5 [shape = 's32[1]{0}', space=sflag, size = 0x4, scoped, tag = 'scoped memory for tpu_custom_call.1']
    #allocation6 [shape = 's32[1]{0}', space=sflag, size = 0x4, scoped, tag = 'scoped memory for tpu_custom_call.1']
    #allocation7 [shape = 'u8[16384]{0}', space=vmem, size = 0x4000, scoped, tag = 'input window, operand 5, single buffered']
    #allocation8 [shape = 'u8[1024]{0}', space=vmem, size = 0x400, scoped, tag = 'output window, operand 0, single buffered']
    #allocation9 [shape = 'u8[1024]{0}', space=vmem, size = 0x400, scoped, tag = 'output window, operand 1, single buffered']
    #allocation10 [shape = 's32[1]{0}', space=sflag, size = 0x4, scoped, tag = 'scoped memory for tpu_custom_call.1']
    #allocation11 [shape = 'u8[1024]{0}', space=vmem, size = 0x400, scoped, tag = 'output window, operand 2, single buffered']
    %17 = vsyncpa [#allocation6], 0
    %18 = vsyncpa [#allocation4], 0
    %19 = vsyncpa [#allocation5], 0
    %20 = vsyncpa [#allocation10], 0
    // Predicated region
    $region2: #{tpu_custom_call.1} parent=1 // pred_check
      _
    $region3: #{tpu_custom_call.1} parent=1 // pred_check_branch
      %22 = sbr.rel (0) target = $region5
    $region4: #{tpu_custom_call.1} parent=1 // pred_region
      %s24 = ssub.s32 32, 32
      %25 = vsyncadd [#allocation6], %s24
      %s27 = sshll.u32 %s0, 4
      %s28 = int_to_ptr.vmem [resolvable:$true] %s27
      %30 = dma.vmem_to_smem %s28, 32, [#allocation3], [#allocation6]
    $region5: #{tpu_custom_call.1} parent=1 // pred_fallthru
      _
    // Predicated region
    $region6: #{tpu_custom_call.1} parent=1 // pred_check
      _
    $region7: #{tpu_custom_call.1} parent=1 // pred_check_branch
      %32 = sbr.rel (0) target = $region9
    $region8: #{tpu_custom_call.1} parent=1 // pred_region
      _
    $region9: #{tpu_custom_call.1} parent=1 // pred_fallthru
      _
    // Predicated region
    $region10: #{tpu_custom_call.1} parent=1 // pred_check
      _
    $region11: #{tpu_custom_call.1} parent=1 // pred_check_branch
      %34 = sbr.rel (0) target = $region13
    $region12: #{tpu_custom_call.1} parent=1 // pred_region
      _
    $region13: #{tpu_custom_call.1} parent=1 // pred_fallthru
      _
    // Predicated region
    $region14: #{tpu_custom_call.1} parent=1 // pred_check
      _
    $region15: #{tpu_custom_call.1} parent=1 // pred_check_branch
      %36 = sbr.rel (0) target = $region17
    $region16: #{tpu_custom_call.1} parent=1 // pred_region
      _
    $region17: #{tpu_custom_call.1} parent=1 // pred_fallthru
      _
    // Predicated region
    $region18: #{tpu_custom_call.1} parent=1 // pred_check
      _
    $region19: #{tpu_custom_call.1} parent=1 // pred_check_branch
      %38 = sbr.rel (0) target = $region21
    $region20: #{tpu_custom_call.1} parent=1 // pred_region
      _
    $region21: #{tpu_custom_call.1} parent=1 // pred_fallthru
      _
    // Predicated region
    $region22: #{tpu_custom_call.1} parent=1 // pred_check
      _
    $region23: #{tpu_custom_call.1} parent=1 // pred_check_branch
      %40 = sbr.rel (0) target = $region25
    $region24: #{tpu_custom_call.1} parent=1 // pred_region
      %s42 = ssub.s32 512, 512
      %43 = vsyncadd [#allocation4], %s42
      %s44 = sshll.u32 [#allocation7], 4
      %s45 = int_to_ptr.vmem [resolvable:$true] %s44
      %50 = dma.hbm_to_vmem [thread:$0]  %s5, 512, %s45, [#allocation4], 128, 128, 8
    $region25: #{tpu_custom_call.1} parent=1 // pred_fallthru
      _
    // Predicated region
    $region26: #{tpu_custom_call.1} parent=1 // pred_check
      _
    $region27: #{tpu_custom_call.1} parent=1 // pred_check_branch
      %52 = sbr.rel (0) target = $region29
    $region28: #{tpu_custom_call.1} parent=1 // pred_region
      _
    $region29: #{tpu_custom_call.1} parent=1 // pred_fallthru
      _
    // Predicated region
    $region30: #{tpu_custom_call.1} parent=1 // pred_check
      _
    $region31: #{tpu_custom_call.1} parent=1 // pred_check_branch
      %54 = sbr.rel (0) target = $region33
    $region32: #{tpu_custom_call.1} parent=1 // pred_region
      _
    $region33: #{tpu_custom_call.1} parent=1 // pred_fallthru
      _
    // Predicated region
    $region34: #{tpu_custom_call.1} parent=1 // pred_check
      _
    $region35: #{tpu_custom_call.1} parent=1 // pred_check_branch
      %56 = sbr.rel (0) target = $region37
    $region36: #{tpu_custom_call.1} parent=1 // pred_region
      _
    $region37: #{tpu_custom_call.1} parent=1 // pred_fallthru
      _
    // Predicated region
    $region38: #{tpu_custom_call.1} parent=1 // pred_check
      _
    $region39: #{tpu_custom_call.1} parent=1 // pred_check_branch
      %58 = sbr.rel (0) target = $region41
    $region40: #{tpu_custom_call.1} parent=1 // pred_region
      %59 = dma.done [#allocation6], 32
    $region41: #{tpu_custom_call.1} parent=1 // pred_fallthru
      _
    // Predicated region
    $region42: #{tpu_custom_call.1} parent=1 // pred_check
      _
    $region43: #{tpu_custom_call.1} parent=1 // pred_check_branch
      %61 = sbr.rel (0) target = $region45
    $region44: #{tpu_custom_call.1} parent=1 // pred_region
      %62 = dma.done [#allocation4], 512
    $region45: #{tpu_custom_call.1} parent=1 // pred_fallthru
      _
    %63 = sfence
    %s64 = sld [smem:[#allocation3]]
    %s65 = scalar_lea.vmem %s1, %s64
    %v66 = vld [vmem:[%s65] sm:$0x1]
    %vm67 = vcmask 253952
    %68 = vst.msk [vmem:[#allocation2] sm:$0x1] %vm67, %v66
    %s69 = sld [smem:[#allocation3 + $0x80]]
    %s70 = scalar_lea.vmem %s1, %s69
    %v71 = vld [vmem:[%s70] sm:$0x1]
    %72 = vst.msk [vmem:[#allocation2 + $0x1] sm:$0x1] %vm67, %v71
    %s73 = sld [smem:[#allocation3 + $0x1]]
    %s74 = scalar_lea.vmem %s1, %s73
    %v75 = vld [vmem:[%s74] sm:$0x1]
    %76 = vst.msk [vmem:[#allocation2 + $0x2] sm:$0x1] %vm67, %v75
    %s77 = sld [smem:[#allocation3 + $0x81]]
    %s78 = scalar_lea.vmem %s1, %s77
    %v79 = vld [vmem:[%s78] sm:$0x1]
    %80 = vst.msk [vmem:[#allocation2 + $0x3] sm:$0x1] %vm67, %v79
    %s81 = sld [smem:[#allocation3 + $0x2]]
    %s82 = scalar_lea.vmem %s1, %s81
    %v83 = vld [vmem:[%s82] sm:$0x1]
    %84 = vst.msk [vmem:[#allocation2 + $0x4] sm:$0x1] %vm67, %v83
    %s85 = sld [smem:[#allocation3 + $0x82]]
    %s86 = scalar_lea.vmem %s1, %s85
    %v87 = vld [vmem:[%s86] sm:$0x1]
    %88 = vst.msk [vmem:[#allocation2 + $0x5] sm:$0x1] %vm67, %v87
    %s89 = sld [smem:[#allocation3 + $0x3]]
    %s90 = scalar_lea.vmem %s1, %s89
    %v91 = vld [vmem:[%s90] sm:$0x1]
    %92 = vst.msk [vmem:[#allocation2 + $0x6] sm:$0x1] %vm67, %v91
    %s93 = sld [smem:[#allocation3 + $0x83]]
    %s94 = scalar_lea.vmem %s1, %s93
    %v95 = vld [vmem:[%s94] sm:$0x1]
    %96 = vst.msk [vmem:[#allocation2 + $0x7] sm:$0x1] %vm67, %v95
    %s97 = sld [smem:[#allocation3 + $0x4]]
    %s98 = scalar_lea.vmem %s1, %s97
    %v99 = vld [vmem:[%s98] sm:$0x1]
    %100 = vst.msk [vmem:[#allocation2 + $0x8] sm:$0x1] %vm67, %v99
    %s101 = sld [smem:[#allocation3 + $0x84]]
    %s102 = scalar_lea.vmem %s1, %s101
    %v103 = vld [vmem:[%s102] sm:$0x1]
    %104 = vst.msk [vmem:[#allocation2 + $0x9] sm:$0x1] %vm67, %v103
    %s105 = sld [smem:[#allocation3 + $0x5]]
    %s106 = scalar_lea.vmem %s1, %s105
    %v107 = vld [vmem:[%s106] sm:$0x1]
    %108 = vst.msk [vmem:[#allocation2 + $0xa] sm:$0x1] %vm67, %v107
    %s109 = sld [smem:[#allocation3 + $0x85]]
    %s110 = scalar_lea.vmem %s1, %s109
    %v111 = vld [vmem:[%s110] sm:$0x1]
    %112 = vst.msk [vmem:[#allocation2 + $0xb] sm:$0x1] %vm67, %v111
    %s113 = sld [smem:[#allocation3 + $0x6]]
    %s114 = scalar_lea.vmem %s1, %s113
    %v115 = vld [vmem:[%s114] sm:$0x1]
    %116 = vst.msk [vmem:[#allocation2 + $0xc] sm:$0x1] %vm67, %v115
    %s117 = sld [smem:[#allocation3 + $0x86]]
    %s118 = scalar_lea.vmem %s1, %s117
    %v119 = vld [vmem:[%s118] sm:$0x1]
    %120 = vst.msk [vmem:[#allocation2 + $0xd] sm:$0x1] %vm67, %v119
    %s121 = sld [smem:[#allocation3 + $0x7]]
    %s122 = scalar_lea.vmem %s1, %s121
    %v123 = vld [vmem:[%s122] sm:$0x1]
    %124 = vst.msk [vmem:[#allocation2 + $0xe] sm:$0x1] %vm67, %v123
    %s125 = sld [smem:[#allocation3 + $0x87]]
    %s126 = scalar_lea.vmem %s1, %s125
    %v127 = vld [vmem:[%s126] sm:$0x1]
    %128 = vst.msk [vmem:[#allocation2 + $0xf] sm:$0x1] %vm67, %v127
    %v129 = vld [vmem:[#allocation2] sm:$0xff]
    %v130 = vld [vmem:[#allocation2 + $0x8] sm:$0xff]
    %v131 = vld [vmem:[%s2] sm:$0xff]
    %v132 = vld [vmem:[%s2 + $0x8] sm:$0xff]
    %v133 = vld [vmem:[%s2 + $0x10] sm:$0xff]
    %v134 = vld [vmem:[%s2 + $0x18] sm:$0xff]
    %v135 = vld [vmem:[%s4] sm:$0x1]
    %v137 = vlaneseq
    %v138 = vshrl.u32 %v137, 7
    %v139 = vsub.s32 0, %v138
    %v140 = vrot.slane %v135, %v139
    %vm142 = vcmask 261120
    %v144 = vsel %vm142, %v129, 0
    %v147 = vsel %vm142, %v130, 0
    %149 = vmatprep.subr.mxu0 0.0
    %150 = vmatpush1.msra.mxu0 0.0
    %151 = vmatprep.subr.mxu0 0.0
    %152 = vmatpush1.msra.mxu0 0.0
    %153 = vmatprep.subr.mxu0 0.0
    %154 = vmatpush1.msra.mxu0 0.0
    %155 = vmatprep.subr.mxu0 0.0
    %156 = vmatpush1.msra.mxu0 0.0
    %157 = vmatprep.subr.mxu0 0.0
    %158 = vmatpush1.msra.mxu0 0.0
    %159 = vmatprep.subr.mxu0 0.0
    %160 = vmatpush1.msra.mxu0 0.0
    %161 = vmatprep.subr.mxu0 0.0
    %162 = vmatpush1.msra.mxu0 0.0
    %163 = vmatprep.subr.mxu0 0.0
    %164 = vmatpush1.msra.mxu0 0.0
    %165 = vmatprep.subr.mxu0 0.0
    %166 = vmatpush1.msra.mxu0 0.0
    %167 = vmatprep.subr.mxu0 0.0
    %168 = vmatpush1.msra.mxu0 0.0
    %169 = vmatprep.subr.mxu0 0.0
    %170 = vmatpush1.msra.mxu0 0.0
    %171 = vmatprep.subr.mxu0 0.0
    %172 = vmatpush1.msra.mxu0 0.0
    %173 = vmatprep.subr.mxu0 0.0
    %174 = vmatpush1.msra.mxu0 %v134
    %175 = vmatprep.subr.mxu0 0.0
    %176 = vmatpush1.msra.mxu0 %v133
    %177 = vmatprep.subr.mxu0 0.0
    %178 = vmatpush1.msra.mxu0 %v132
    %179 = vmatprep.subr.mxu0 0.0
    %180 = vmatpush1.msra.mxu0 %v131
    %181 = vmatprep.subr.mxu0 0.0
    %182 = vmatpush2.msra.mxu0 0.0
    %183 = vmatprep.subr.mxu0 0.0
    %184 = vmatpush2.msra.mxu0 0.0
    %185 = vmatprep.subr.mxu0 0.0
    %186 = vmatpush2.msra.mxu0 0.0
    %187 = vmatprep.subr.mxu0 0.0
    %188 = vmatpush2.msra.mxu0 0.0
    %189 = vmatprep.subr.mxu0 0.0
    %190 = vmatpush2.msra.mxu0 0.0
    %191 = vmatprep.subr.mxu0 0.0
    %192 = vmatpush2.msra.mxu0 0.0
    %193 = vmatprep.subr.mxu0 0.0
    %194 = vmatpush2.msra.mxu0 0.0
    %195 = vmatprep.subr.mxu0 0.0
    %196 = vmatpush2.msra.mxu0 0.0
    %197 = vmatprep.subr.mxu0 0.0
    %198 = vmatpush2.msra.mxu0 0.0
    %199 = vmatprep.subr.mxu0 0.0
    %200 = vmatpush2.msra.mxu0 0.0
    %201 = vmatprep.subr.mxu0 0.0
    %202 = vmatpush2.msra.mxu0 0.0
    %203 = vmatprep.subr.mxu0 0.0
    %204 = vmatpush2.msra.mxu0 0.0
    %205 = vmatprep.subr.mxu0 0.0
    %206 = vmatpush2.msra.mxu0 0.0
    %207 = vmatprep.subr.mxu0 0.0
    %208 = vmatpush2.msra.mxu0 0.0
    %209 = vmatprep.subr.mxu0 0.0
    %210 = vmatpush2.msra.mxu0 0.0
    %211 = vmatprep.subr.mxu0 0.0
    %212 = vmatpush2.msra.mxu0 0.0
    %213 = vmatprep.mubr.f32.mxu0 0.0
    %214 = vmatmul.mubr.f32.gmra.mxu0 %v144
    %v215 = vpop.f32.mrf.mxu0
    %v216 = vadd.f32 %v140, %v215
    %v217 = vpop.f32.mrf.mxu0
    %218 = vmatprep.mubr.f32.mxu0 0.0
    %219 = vmatmul.mubr.f32.gmra.mxu0 %v147
    %v220 = vpop.f32.mrf.mxu0
    %v221 = vadd.f32 %v140, %v220
    %v222 = vpop.f32.mrf.mxu0
    %223 = vdwg.mxu0
    %v224 = vld [vmem:[%s3] sm:$0xff]
    %v225 = vld [vmem:[%s3 + $0x8] sm:$0xff]
    %v226 = vld [vmem:[%s3 + $0x10] sm:$0xff]
    %v227 = vld [vmem:[%s3 + $0x18] sm:$0xff]
    %v228 = vld [vmem:[%s7] sm:$0x3]
    %v229 = vld [vmem:[%s8] sm:$0x3]
    %v231 = vsel %vm142, %v228, 0
    %233 = vmatprep.subr.mxu0 0.0
    %234 = vmatpush1.msra.mxu0 0.0
    %235 = vmatprep.subr.mxu0 0.0
    %236 = vmatpush1.msra.mxu0 0.0
    %237 = vmatprep.subr.mxu0 0.0
    %238 = vmatpush1.msra.mxu0 0.0
    %239 = vmatprep.subr.mxu0 0.0
    %240 = vmatpush1.msra.mxu0 0.0
    %241 = vmatprep.subr.mxu0 0.0
    %242 = vmatpush1.msra.mxu0 0.0
    %243 = vmatprep.subr.mxu0 0.0
    %244 = vmatpush1.msra.mxu0 0.0
    %245 = vmatprep.subr.mxu0 0.0
    %246 = vmatpush1.msra.mxu0 0.0
    %247 = vmatprep.subr.mxu0 0.0
    %248 = vmatpush1.msra.mxu0 0.0
    %249 = vmatprep.subr.mxu0 0.0
    %250 = vmatpush1.msra.mxu0 0.0
    %251 = vmatprep.subr.mxu0 0.0
    %252 = vmatpush1.msra.mxu0 0.0
    %253 = vmatprep.subr.mxu0 0.0
    %254 = vmatpush1.msra.mxu0 0.0
    %255 = vmatprep.subr.mxu0 0.0
    %256 = vmatpush1.msra.mxu0 0.0
    %257 = vmatprep.subr.mxu0 0.0
    %258 = vmatpush1.msra.mxu0 %v227
    %259 = vmatprep.subr.mxu0 0.0
    %260 = vmatpush1.msra.mxu0 %v226
    %261 = vmatprep.subr.mxu0 0.0
    %262 = vmatpush1.msra.mxu0 %v225
    %263 = vmatprep.subr.mxu0 0.0
    %264 = vmatpush1.msra.mxu0 %v224
    %265 = vmatprep.subr.mxu0 0.0
    %266 = vmatpush2.msra.mxu0 0.0
    %267 = vmatprep.subr.mxu0 0.0
    %268 = vmatpush2.msra.mxu0 0.0
    %269 = vmatprep.subr.mxu0 0.0
    %270 = vmatpush2.msra.mxu0 0.0
    %271 = vmatprep.subr.mxu0 0.0
    %272 = vmatpush2.msra.mxu0 0.0
    %273 = vmatprep.subr.mxu0 0.0
    %274 = vmatpush2.msra.mxu0 0.0
    %275 = vmatprep.subr.mxu0 0.0
    %276 = vmatpush2.msra.mxu0 0.0
    %277 = vmatprep.subr.mxu0 0.0
    %278 = vmatpush2.msra.mxu0 0.0
    %279 = vmatprep.subr.mxu0 0.0
    %280 = vmatpush2.msra.mxu0 0.0
    %281 = vmatprep.subr.mxu0 0.0
    %282 = vmatpush2.msra.mxu0 0.0
    %283 = vmatprep.subr.mxu0 0.0
    %284 = vmatpush2.msra.mxu0 0.0
    %285 = vmatprep.subr.mxu0 0.0
    %286 = vmatpush2.msra.mxu0 0.0
    %287 = vmatprep.subr.mxu0 0.0
    %288 = vmatpush2.msra.mxu0 0.0
    %289 = vmatprep.subr.mxu0 0.0
    %290 = vmatpush2.msra.mxu0 0.0
    %291 = vmatprep.subr.mxu0 0.0
    %292 = vmatpush2.msra.mxu0 0.0
    %293 = vmatprep.subr.mxu0 0.0
    %294 = vmatpush2.msra.mxu0 0.0
    %295 = vmatprep.subr.mxu0 0.0
    %296 = vmatpush2.msra.mxu0 0.0
    %297 = vmatprep.mubr.f32.mxu0 0.0
    %298 = vmatmul.mubr.f32.gmra.mxu0 %v231
    %v299 = vpop.f32.mrf.mxu0
    %v300 = vadd.f32 0.0, %v299
    %v301 = vpop.f32.mrf.mxu0
    %302 = vdwg.mxu0
    %v303 = vadd.f32 %v216, %v300
    %v304 = vxor.u32 %v303, 2147483648
    %v305 = vmul.f32 %v304, 1.442695
    %v306 = vpow.pop %v305
    %v307 = vadd.f32 %v306, 1.0
    %v308 = vrcp.pop %v307
    %v309 = vmul.f32 1.0, %v308
    %v310 = vtanh.pop %v303
    %312 = vrot.lane.b32.xlu0 %v229, 32
    %v313 = vpop.permute.xlu0 %312
    %v315 = vmul.f32 %v309, %v313
    %317 = vrot.lane.b32.xlu0 %v310, 64
    %v318 = vpop.permute.xlu0 %317
    %v320 = vmul.f32 %v309, %v318
    %322 = vrot.lane.b32.xlu0 %v320, 32
    %v323 = vpop.permute.xlu0 %322
    %v325 = vadd.f32 %v315, %v323
    %v326 = vtanh.pop %v325
    %328 = vrot.lane.b32.xlu0 %v326, 64
    %v329 = vpop.permute.xlu0 %328
    %v331 = vmul.f32 %v309, %v329
    %333 = vrot.lane.b32.xlu0 %v331, 32
    %v334 = vpop.permute.xlu0 %333
    %v335 = vsel %vm142, %v334, 0
    %337 = vmatprep.subr.mxu0 0.0
    %338 = vmatpush1.msra.mxu0 0.0
    %339 = vmatprep.subr.mxu0 0.0
    %340 = vmatpush1.msra.mxu0 0.0
    %341 = vmatprep.subr.mxu0 0.0
    %342 = vmatpush1.msra.mxu0 0.0
    %343 = vmatprep.subr.mxu0 0.0
    %344 = vmatpush1.msra.mxu0 0.0
    %345 = vmatprep.subr.mxu0 0.0
    %346 = vmatpush1.msra.mxu0 0.0
    %347 = vmatprep.subr.mxu0 0.0
    %348 = vmatpush1.msra.mxu0 0.0
    %349 = vmatprep.subr.mxu0 0.0
    %350 = vmatpush1.msra.mxu0 0.0
    %351 = vmatprep.subr.mxu0 0.0
    %352 = vmatpush1.msra.mxu0 0.0
    %353 = vmatprep.subr.mxu0 0.0
    %354 = vmatpush1.msra.mxu0 0.0
    %355 = vmatprep.subr.mxu0 0.0
    %356 = vmatpush1.msra.mxu0 0.0
    %357 = vmatprep.subr.mxu0 0.0
    %358 = vmatpush1.msra.mxu0 0.0
    %359 = vmatprep.subr.mxu0 0.0
    %360 = vmatpush1.msra.mxu0 0.0
    %361 = vmatprep.subr.mxu0 0.0
    %362 = vmatpush1.msra.mxu0 %v227
    %363 = vmatprep.subr.mxu0 0.0
    %364 = vmatpush1.msra.mxu0 %v226
    %365 = vmatprep.subr.mxu0 0.0
    %366 = vmatpush1.msra.mxu0 %v225
    %367 = vmatprep.subr.mxu0 0.0
    %368 = vmatpush1.msra.mxu0 %v224
    %369 = vmatprep.subr.mxu0 0.0
    %370 = vmatpush2.msra.mxu0 0.0
    %371 = vmatprep.subr.mxu0 0.0
    %372 = vmatpush2.msra.mxu0 0.0
    %373 = vmatprep.subr.mxu0 0.0
    %374 = vmatpush2.msra.mxu0 0.0
    %375 = vmatprep.subr.mxu0 0.0
    %376 = vmatpush2.msra.mxu0 0.0
    %377 = vmatprep.subr.mxu0 0.0
    %378 = vmatpush2.msra.mxu0 0.0
    %379 = vmatprep.subr.mxu0 0.0
    %380 = vmatpush2.msra.mxu0 0.0
    %381 = vmatprep.subr.mxu0 0.0
    %382 = vmatpush2.msra.mxu0 0.0
    %383 = vmatprep.subr.mxu0 0.0
    %384 = vmatpush2.msra.mxu0 0.0
    %385 = vmatprep.subr.mxu0 0.0
    %386 = vmatpush2.msra.mxu0 0.0
    %387 = vmatprep.subr.mxu0 0.0
    %388 = vmatpush2.msra.mxu0 0.0
    %389 = vmatprep.subr.mxu0 0.0
    %390 = vmatpush2.msra.mxu0 0.0
    %391 = vmatprep.subr.mxu0 0.0
    %392 = vmatpush2.msra.mxu0 0.0
    %393 = vmatprep.subr.mxu0 0.0
    %394 = vmatpush2.msra.mxu0 0.0
    %395 = vmatprep.subr.mxu0 0.0
    %396 = vmatpush2.msra.mxu0 0.0
    %397 = vmatprep.subr.mxu0 0.0
    %398 = vmatpush2.msra.mxu0 0.0
    %399 = vmatprep.subr.mxu0 0.0
    %400 = vmatpush2.msra.mxu0 0.0
    %401 = vmatprep.mubr.f32.mxu0 0.0
    %402 = vmatmul.mubr.f32.gmra.mxu0 %v335
    %v403 = vpop.f32.mrf.mxu0
    %v404 = vadd.f32 0.0, %v403
    %v405 = vpop.f32.mrf.mxu0
    %406 = vdwg.mxu0
    %v408 = vrot.slane %v404, 6
    %v410 = vadd.f32 %v216, %v408
    %v411 = vxor.u32 %v410, 2147483648
    %v412 = vmul.f32 %v411, 1.442695
    %v413 = vpow.pop %v412
    %v414 = vadd.f32 %v413, 1.0
    %v415 = vrcp.pop %v414
    %v416 = vmul.f32 1.0, %v415
    %v417 = vtanh.pop %v410
    %v419 = vrot.slane %v325, 6
    %v421 = vmul.f32 %v416, %v419
    %423 = vrot.lane.b32.xlu0 %v417, 64
    %v424 = vpop.permute.xlu0 %423
    %v426 = vmul.f32 %v416, %v424
    %428 = vrot.lane.b32.xlu0 %v426, 32
    %v429 = vpop.permute.xlu0 %428
    %v431 = vadd.f32 %v421, %v429
    %v432 = vtanh.pop %v431
    %434 = vrot.lane.b32.xlu0 %v432, 64
    %v435 = vpop.permute.xlu0 %434
    %v437 = vmul.f32 %v416, %v435
    %v439 = vrot.slane %v437, 2
    %440 = vrot.lane.b32.xlu0 %v439, 32
    %v441 = vpop.permute.xlu0 %440
    %v442 = vsel %vm142, %v441, 0
    %444 = vmatprep.subr.mxu0 0.0
    %445 = vmatpush1.msra.mxu0 0.0
    %446 = vmatprep.subr.mxu0 0.0
    %447 = vmatpush1.msra.mxu0 0.0
    %448 = vmatprep.subr.mxu0 0.0
    %449 = vmatpush1.msra.mxu0 0.0
    %450 = vmatprep.subr.mxu0 0.0
    %451 = vmatpush1.msra.mxu0 0.0
    %452 = vmatprep.subr.mxu0 0.0
    %453 = vmatpush1.msra.mxu0 0.0
    %454 = vmatprep.subr.mxu0 0.0
    %455 = vmatpush1.msra.mxu0 0.0
    %456 = vmatprep.subr.mxu0 0.0
    %457 = vmatpush1.msra.mxu0 0.0
    %458 = vmatprep.subr.mxu0 0.0
    %459 = vmatpush1.msra.mxu0 0.0
    %460 = vmatprep.subr.mxu0 0.0
    %461 = vmatpush1.msra.mxu0 0.0
    %462 = vmatprep.subr.mxu0 0.0
    %463 = vmatpush1.msra.mxu0 0.0
    %464 = vmatprep.subr.mxu0 0.0
    %465 = vmatpush1.msra.mxu0 0.0
    %466 = vmatprep.subr.mxu0 0.0
    %467 = vmatpush1.msra.mxu0 0.0
    %468 = vmatprep.subr.mxu0 0.0
    %469 = vmatpush1.msra.mxu0 %v227
    %470 = vmatprep.subr.mxu0 0.0
    %471 = vmatpush1.msra.mxu0 %v226
    %472 = vmatprep.subr.mxu0 0.0
    %473 = vmatpush1.msra.mxu0 %v225
    %474 = vmatprep.subr.mxu0 0.0
    %475 = vmatpush1.msra.mxu0 %v224
    %476 = vmatprep.subr.mxu0 0.0
    %477 = vmatpush2.msra.mxu0 0.0
    %478 = vmatprep.subr.mxu0 0.0
    %479 = vmatpush2.msra.mxu0 0.0
    %480 = vmatprep.subr.mxu0 0.0
    %481 = vmatpush2.msra.mxu0 0.0
    %482 = vmatprep.subr.mxu0 0.0
    %483 = vmatpush2.msra.mxu0 0.0
    %484 = vmatprep.subr.mxu0 0.0
    %485 = vmatpush2.msra.mxu0 0.0
    %486 = vmatprep.subr.mxu0 0.0
    %487 = vmatpush2.msra.mxu0 0.0
    %488 = vmatprep.subr.mxu0 0.0
    %489 = vmatpush2.msra.mxu0 0.0
    %490 = vmatprep.subr.mxu0 0.0
    %491 = vmatpush2.msra.mxu0 0.0
    %492 = vmatprep.subr.mxu0 0.0
    %493 = vmatpush2.msra.mxu0 0.0
    %494 = vmatprep.subr.mxu0 0.0
    %495 = vmatpush2.msra.mxu0 0.0
    %496 = vmatprep.subr.mxu0 0.0
    %497 = vmatpush2.msra.mxu0 0.0
    %498 = vmatprep.subr.mxu0 0.0
    %499 = vmatpush2.msra.mxu0 0.0
    %500 = vmatprep.subr.mxu0 0.0
    %501 = vmatpush2.msra.mxu0 0.0
    %502 = vmatprep.subr.mxu0 0.0
    %503 = vmatpush2.msra.mxu0 0.0
    %504 = vmatprep.subr.mxu0 0.0
    %505 = vmatpush2.msra.mxu0 0.0
    %506 = vmatprep.subr.mxu0 0.0
    %507 = vmatpush2.msra.mxu0 0.0
    %508 = vmatprep.mubr.f32.mxu0 0.0
    %509 = vmatmul.mubr.f32.gmra.mxu0 %v442
    %v510 = vpop.f32.mrf.mxu0
    %v511 = vadd.f32 0.0, %v510
    %v512 = vpop.f32.mrf.mxu0
    %513 = vdwg.mxu0
    %v515 = vrot.slane %v511, 4
    %v517 = vadd.f32 %v216, %v515
    %v518 = vxor.u32 %v517, 2147483648
    %v519 = vmul.f32 %v518, 1.442695
    %v520 = vpow.pop %v519
    %v521 = vadd.f32 %v520, 1.0
    %v522 = vrcp.pop %v521
    %v523 = vmul.f32 1.0, %v522
    %v524 = vtanh.pop %v517
    %v526 = vrot.slane %v431, 6
    %v528 = vmul.f32 %v523, %v526
    %530 = vrot.lane.b32.xlu0 %v524, 64
    %v531 = vpop.permute.xlu0 %530
    %v533 = vmul.f32 %v523, %v531
    %535 = vrot.lane.b32.xlu0 %v533, 32
    %v536 = vpop.permute.xlu0 %535
    %v538 = vadd.f32 %v528, %v536
    %v539 = vtanh.pop %v538
    %541 = vrot.lane.b32.xlu0 %v539, 64
    %v542 = vpop.permute.xlu0 %541
    %v544 = vmul.f32 %v523, %v542
    %v546 = vrot.slane %v544, 4
    %547 = vrot.lane.b32.xlu0 %v546, 32
    %v548 = vpop.permute.xlu0 %547
    %v549 = vsel %vm142, %v548, 0
    %551 = vmatprep.subr.mxu0 0.0
    %552 = vmatpush1.msra.mxu0 0.0
    %553 = vmatprep.subr.mxu0 0.0
    %554 = vmatpush1.msra.mxu0 0.0
    %555 = vmatprep.subr.mxu0 0.0
    %556 = vmatpush1.msra.mxu0 0.0
    %557 = vmatprep.subr.mxu0 0.0
    %558 = vmatpush1.msra.mxu0 0.0
    %559 = vmatprep.subr.mxu0 0.0
    %560 = vmatpush1.msra.mxu0 0.0
    %561 = vmatprep.subr.mxu0 0.0
    %562 = vmatpush1.msra.mxu0 0.0
    %563 = vmatprep.subr.mxu0 0.0
    %564 = vmatpush1.msra.mxu0 0.0
    %565 = vmatprep.subr.mxu0 0.0
    %566 = vmatpush1.msra.mxu0 0.0
    %567 = vmatprep.subr.mxu0 0.0
    %568 = vmatpush1.msra.mxu0 0.0
    %569 = vmatprep.subr.mxu0 0.0
    %570 = vmatpush1.msra.mxu0 0.0
    %571 = vmatprep.subr.mxu0 0.0
    %572 = vmatpush1.msra.mxu0 0.0
    %573 = vmatprep.subr.mxu0 0.0
    %574 = vmatpush1.msra.mxu0 0.0
    %575 = vmatprep.subr.mxu0 0.0
    %576 = vmatpush1.msra.mxu0 %v227
    %577 = vmatprep.subr.mxu0 0.0
    %578 = vmatpush1.msra.mxu0 %v226
    %579 = vmatprep.subr.mxu0 0.0
    %580 = vmatpush1.msra.mxu0 %v225
    %581 = vmatprep.subr.mxu0 0.0
    %582 = vmatpush1.msra.mxu0 %v224
    %583 = vmatprep.subr.mxu0 0.0
    %584 = vmatpush2.msra.mxu0 0.0
    %585 = vmatprep.subr.mxu0 0.0
    %586 = vmatpush2.msra.mxu0 0.0
    %587 = vmatprep.subr.mxu0 0.0
    %588 = vmatpush2.msra.mxu0 0.0
    %589 = vmatprep.subr.mxu0 0.0
    %590 = vmatpush2.msra.mxu0 0.0
    %591 = vmatprep.subr.mxu0 0.0
    %592 = vmatpush2.msra.mxu0 0.0
    %593 = vmatprep.subr.mxu0 0.0
    %594 = vmatpush2.msra.mxu0 0.0
    %595 = vmatprep.subr.mxu0 0.0
    %596 = vmatpush2.msra.mxu0 0.0
    %597 = vmatprep.subr.mxu0 0.0
    %598 = vmatpush2.msra.mxu0 0.0
    %599 = vmatprep.subr.mxu0 0.0
    %600 = vmatpush2.msra.mxu0 0.0
    %601 = vmatprep.subr.mxu0 0.0
    %602 = vmatpush2.msra.mxu0 0.0
    %603 = vmatprep.subr.mxu0 0.0
    %604 = vmatpush2.msra.mxu0 0.0
    %605 = vmatprep.subr.mxu0 0.0
    %606 = vmatpush2.msra.mxu0 0.0
    %607 = vmatprep.subr.mxu0 0.0
    %608 = vmatpush2.msra.mxu0 0.0
    %609 = vmatprep.subr.mxu0 0.0
    %610 = vmatpush2.msra.mxu0 0.0
    %611 = vmatprep.subr.mxu0 0.0
    %612 = vmatpush2.msra.mxu0 0.0
    %613 = vmatprep.subr.mxu0 0.0
    %614 = vmatpush2.msra.mxu0 0.0
    %615 = vmatprep.mubr.f32.mxu0 0.0
    %616 = vmatmul.mubr.f32.gmra.mxu0 %v549
    %v617 = vpop.f32.mrf.mxu0
    %v618 = vadd.f32 0.0, %v617
    %v619 = vpop.f32.mrf.mxu0
    %620 = vdwg.mxu0
    %v622 = vrot.slane %v618, 2
    %v624 = vadd.f32 %v216, %v622
    %v625 = vxor.u32 %v624, 2147483648
    %v626 = vmul.f32 %v625, 1.442695
    %v627 = vpow.pop %v626
    %v628 = vadd.f32 %v627, 1.0
    %v629 = vrcp.pop %v628
    %v630 = vmul.f32 1.0, %v629
    %v631 = vtanh.pop %v624
    %v633 = vrot.slane %v538, 6
    %v635 = vmul.f32 %v630, %v633
    %637 = vrot.lane.b32.xlu0 %v631, 64
    %v638 = vpop.permute.xlu0 %637
    %v640 = vmul.f32 %v630, %v638
    %642 = vrot.lane.b32.xlu0 %v640, 32
    %v643 = vpop.permute.xlu0 %642
    %v645 = vadd.f32 %v635, %v643
    %v646 = vtanh.pop %v645
    %648 = vrot.lane.b32.xlu0 %v646, 64
    %v649 = vpop.permute.xlu0 %648
    %v651 = vmul.f32 %v630, %v649
    %v653 = vrot.slane %v651, 6
    %654 = vrot.lane.b32.xlu0 %v653, 32
    %v655 = vpop.permute.xlu0 %654
    %v656 = vsel %vm142, %v655, 0
    %658 = vmatprep.subr.mxu0 0.0
    %659 = vmatpush1.msra.mxu0 0.0
    %660 = vmatprep.subr.mxu0 0.0
    %661 = vmatpush1.msra.mxu0 0.0
    %662 = vmatprep.subr.mxu0 0.0
    %663 = vmatpush1.msra.mxu0 0.0
    %664 = vmatprep.subr.mxu0 0.0
    %665 = vmatpush1.msra.mxu0 0.0
    %666 = vmatprep.subr.mxu0 0.0
    %667 = vmatpush1.msra.mxu0 0.0
    %668 = vmatprep.subr.mxu0 0.0
    %669 = vmatpush1.msra.mxu0 0.0
    %670 = vmatprep.subr.mxu0 0.0
    %671 = vmatpush1.msra.mxu0 0.0
    %672 = vmatprep.subr.mxu0 0.0
    %673 = vmatpush1.msra.mxu0 0.0
    %674 = vmatprep.subr.mxu0 0.0
    %675 = vmatpush1.msra.mxu0 0.0
    %676 = vmatprep.subr.mxu0 0.0
    %677 = vmatpush1.msra.mxu0 0.0
    %678 = vmatprep.subr.mxu0 0.0
    %679 = vmatpush1.msra.mxu0 0.0
    %680 = vmatprep.subr.mxu0 0.0
    %681 = vmatpush1.msra.mxu0 0.0
    %682 = vmatprep.subr.mxu0 0.0
    %683 = vmatpush1.msra.mxu0 %v227
    %684 = vmatprep.subr.mxu0 0.0
    %685 = vmatpush1.msra.mxu0 %v226
    %686 = vmatprep.subr.mxu0 0.0
    %687 = vmatpush1.msra.mxu0 %v225
    %688 = vmatprep.subr.mxu0 0.0
    %689 = vmatpush1.msra.mxu0 %v224
    %690 = vmatprep.subr.mxu0 0.0
    %691 = vmatpush2.msra.mxu0 0.0
    %692 = vmatprep.subr.mxu0 0.0
    %693 = vmatpush2.msra.mxu0 0.0
    %694 = vmatprep.subr.mxu0 0.0
    %695 = vmatpush2.msra.mxu0 0.0
    %696 = vmatprep.subr.mxu0 0.0
    %697 = vmatpush2.msra.mxu0 0.0
    %698 = vmatprep.subr.mxu0 0.0
    %699 = vmatpush2.msra.mxu0 0.0
    %700 = vmatprep.subr.mxu0 0.0
    %701 = vmatpush2.msra.mxu0 0.0
    %702 = vmatprep.subr.mxu0 0.0
    %703 = vmatpush2.msra.mxu0 0.0
    %704 = vmatprep.subr.mxu0 0.0
    %705 = vmatpush2.msra.mxu0 0.0
    %706 = vmatprep.subr.mxu0 0.0
    %707 = vmatpush2.msra.mxu0 0.0
    %708 = vmatprep.subr.mxu0 0.0
    %709 = vmatpush2.msra.mxu0 0.0
    %710 = vmatprep.subr.mxu0 0.0
    %711 = vmatpush2.msra.mxu0 0.0
    %712 = vmatprep.subr.mxu0 0.0
    %713 = vmatpush2.msra.mxu0 0.0
    %714 = vmatprep.subr.mxu0 0.0
    %715 = vmatpush2.msra.mxu0 0.0
    %716 = vmatprep.subr.mxu0 0.0
    %717 = vmatpush2.msra.mxu0 0.0
    %718 = vmatprep.subr.mxu0 0.0
    %719 = vmatpush2.msra.mxu0 0.0
    %720 = vmatprep.subr.mxu0 0.0
    %721 = vmatpush2.msra.mxu0 0.0
    %722 = vmatprep.mubr.f32.mxu0 0.0
    %723 = vmatmul.mubr.f32.gmra.mxu0 %v656
    %v724 = vpop.f32.mrf.mxu0
    %v725 = vadd.f32 0.0, %v724
    %v726 = vpop.f32.mrf.mxu0
    %727 = vdwg.mxu0
    %v728 = vadd.f32 %v221, %v725
    %v729 = vxor.u32 %v728, 2147483648
    %v730 = vmul.f32 %v729, 1.442695
    %v731 = vpow.pop %v730
    %v732 = vadd.f32 %v731, 1.0
    %v733 = vrcp.pop %v732
    %v734 = vmul.f32 1.0, %v733
    %v735 = vtanh.pop %v728
    %v737 = vrot.slane %v645, 6
    %v739 = vmul.f32 %v734, %v737
    %741 = vrot.lane.b32.xlu0 %v735, 64
    %v742 = vpop.permute.xlu0 %741
    %v744 = vmul.f32 %v734, %v742
    %746 = vrot.lane.b32.xlu0 %v744, 32
    %v747 = vpop.permute.xlu0 %746
    %v749 = vadd.f32 %v739, %v747
    %v750 = vtanh.pop %v749
    %752 = vrot.lane.b32.xlu0 %v750, 64
    %v753 = vpop.permute.xlu0 %752
    %v755 = vmul.f32 %v734, %v753
    %757 = vrot.lane.b32.xlu0 %v755, 32
    %v758 = vpop.permute.xlu0 %757
    %v759 = vsel %vm142, %v758, 0
    %761 = vmatprep.subr.mxu0 0.0
    %762 = vmatpush1.msra.mxu0 0.0
    %763 = vmatprep.subr.mxu0 0.0
    %764 = vmatpush1.msra.mxu0 0.0
    %765 = vmatprep.subr.mxu0 0.0
    %766 = vmatpush1.msra.mxu0 0.0
    %767 = vmatprep.subr.mxu0 0.0
    %768 = vmatpush1.msra.mxu0 0.0
    %769 = vmatprep.subr.mxu0 0.0
    %770 = vmatpush1.msra.mxu0 0.0
    %771 = vmatprep.subr.mxu0 0.0
    %772 = vmatpush1.msra.mxu0 0.0
    %773 = vmatprep.subr.mxu0 0.0
    %774 = vmatpush1.msra.mxu0 0.0
    %775 = vmatprep.subr.mxu0 0.0
    %776 = vmatpush1.msra.mxu0 0.0
    %777 = vmatprep.subr.mxu0 0.0
    %778 = vmatpush1.msra.mxu0 0.0
    %779 = vmatprep.subr.mxu0 0.0
    %780 = vmatpush1.msra.mxu0 0.0
    %781 = vmatprep.subr.mxu0 0.0
    %782 = vmatpush1.msra.mxu0 0.0
    %783 = vmatprep.subr.mxu0 0.0
    %784 = vmatpush1.msra.mxu0 0.0
    %785 = vmatprep.subr.mxu0 0.0
    %786 = vmatpush1.msra.mxu0 %v227
    %787 = vmatprep.subr.mxu0 0.0
    %788 = vmatpush1.msra.mxu0 %v226
    %789 = vmatprep.subr.mxu0 0.0
    %790 = vmatpush1.msra.mxu0 %v225
    %791 = vmatprep.subr.mxu0 0.0
    %792 = vmatpush1.msra.mxu0 %v224
    %793 = vmatprep.subr.mxu0 0.0
    %794 = vmatpush2.msra.mxu0 0.0
    %795 = vmatprep.subr.mxu0 0.0
    %796 = vmatpush2.msra.mxu0 0.0
    %797 = vmatprep.subr.mxu0 0.0
    %798 = vmatpush2.msra.mxu0 0.0
    %799 = vmatprep.subr.mxu0 0.0
    %800 = vmatpush2.msra.mxu0 0.0
    %801 = vmatprep.subr.mxu0 0.0
    %802 = vmatpush2.msra.mxu0 0.0
    %803 = vmatprep.subr.mxu0 0.0
    %804 = vmatpush2.msra.mxu0 0.0
    %805 = vmatprep.subr.mxu0 0.0
    %806 = vmatpush2.msra.mxu0 0.0
    %807 = vmatprep.subr.mxu0 0.0
    %808 = vmatpush2.msra.mxu0 0.0
    %809 = vmatprep.subr.mxu0 0.0
    %810 = vmatpush2.msra.mxu0 0.0
    %811 = vmatprep.subr.mxu0 0.0
    %812 = vmatpush2.msra.mxu0 0.0
    %813 = vmatprep.subr.mxu0 0.0
    %814 = vmatpush2.msra.mxu0 0.0
    %815 = vmatprep.subr.mxu0 0.0
    %816 = vmatpush2.msra.mxu0 0.0
    %817 = vmatprep.subr.mxu0 0.0
    %818 = vmatpush2.msra.mxu0 0.0
    %819 = vmatprep.subr.mxu0 0.0
    %820 = vmatpush2.msra.mxu0 0.0
    %821 = vmatprep.subr.mxu0 0.0
    %822 = vmatpush2.msra.mxu0 0.0
    %823 = vmatprep.subr.mxu0 0.0
    %824 = vmatpush2.msra.mxu0 0.0
    %825 = vmatprep.mubr.f32.mxu0 0.0
    %826 = vmatmul.mubr.f32.gmra.mxu0 %v759
    %v827 = vpop.f32.mrf.mxu0
    %v828 = vadd.f32 0.0, %v827
    %v829 = vpop.f32.mrf.mxu0
    %830 = vdwg.mxu0
    %v832 = vrot.slane %v828, 6
    %v834 = vadd.f32 %v221, %v832
    %v835 = vxor.u32 %v834, 2147483648
    %v836 = vmul.f32 %v835, 1.442695
    %v837 = vpow.pop %v836
    %v838 = vadd.f32 %v837, 1.0
    %v839 = vrcp.pop %v838
    %v840 = vmul.f32 1.0, %v839
    %v841 = vtanh.pop %v834
    %v843 = vrot.slane %v749, 6
    %v845 = vmul.f32 %v840, %v843
    %847 = vrot.lane.b32.xlu0 %v841, 64
    %v848 = vpop.permute.xlu0 %847
    %v850 = vmul.f32 %v840, %v848
    %852 = vrot.lane.b32.xlu0 %v850, 32
    %v853 = vpop.permute.xlu0 %852
    %v855 = vadd.f32 %v845, %v853
    %v856 = vtanh.pop %v855
    %858 = vrot.lane.b32.xlu0 %v856, 64
    %v859 = vpop.permute.xlu0 %858
    %v861 = vmul.f32 %v840, %v859
    %v863 = vrot.slane %v861, 2
    %864 = vrot.lane.b32.xlu0 %v863, 32
    %v865 = vpop.permute.xlu0 %864
    %v866 = vsel %vm142, %v865, 0
    %868 = vmatprep.subr.mxu0 0.0
    %869 = vmatpush1.msra.mxu0 0.0
    %870 = vmatprep.subr.mxu0 0.0
    %871 = vmatpush1.msra.mxu0 0.0
    %872 = vmatprep.subr.mxu0 0.0
    %873 = vmatpush1.msra.mxu0 0.0
    %874 = vmatprep.subr.mxu0 0.0
    %875 = vmatpush1.msra.mxu0 0.0
    %876 = vmatprep.subr.mxu0 0.0
    %877 = vmatpush1.msra.mxu0 0.0
    %878 = vmatprep.subr.mxu0 0.0
    %879 = vmatpush1.msra.mxu0 0.0
    %880 = vmatprep.subr.mxu0 0.0
    %881 = vmatpush1.msra.mxu0 0.0
    %882 = vmatprep.subr.mxu0 0.0
    %883 = vmatpush1.msra.mxu0 0.0
    %884 = vmatprep.subr.mxu0 0.0
    %885 = vmatpush1.msra.mxu0 0.0
    %886 = vmatprep.subr.mxu0 0.0
    %887 = vmatpush1.msra.mxu0 0.0
    %888 = vmatprep.subr.mxu0 0.0
    %889 = vmatpush1.msra.mxu0 0.0
    %890 = vmatprep.subr.mxu0 0.0
    %891 = vmatpush1.msra.mxu0 0.0
    %892 = vmatprep.subr.mxu0 0.0
    %893 = vmatpush1.msra.mxu0 %v227
    %894 = vmatprep.subr.mxu0 0.0
    %895 = vmatpush1.msra.mxu0 %v226
    %896 = vmatprep.subr.mxu0 0.0
    %897 = vmatpush1.msra.mxu0 %v225
    %898 = vmatprep.subr.mxu0 0.0
    %899 = vmatpush1.msra.mxu0 %v224
    %900 = vmatprep.subr.mxu0 0.0
    %901 = vmatpush2.msra.mxu0 0.0
    %902 = vmatprep.subr.mxu0 0.0
    %903 = vmatpush2.msra.mxu0 0.0
    %904 = vmatprep.subr.mxu0 0.0
    %905 = vmatpush2.msra.mxu0 0.0
    %906 = vmatprep.subr.mxu0 0.0
    %907 = vmatpush2.msra.mxu0 0.0
    %908 = vmatprep.subr.mxu0 0.0
    %909 = vmatpush2.msra.mxu0 0.0
    %910 = vmatprep.subr.mxu0 0.0
    %911 = vmatpush2.msra.mxu0 0.0
    %912 = vmatprep.subr.mxu0 0.0
    %913 = vmatpush2.msra.mxu0 0.0
    %914 = vmatprep.subr.mxu0 0.0
    %915 = vmatpush2.msra.mxu0 0.0
    %916 = vmatprep.subr.mxu0 0.0
    %917 = vmatpush2.msra.mxu0 0.0
    %918 = vmatprep.subr.mxu0 0.0
    %919 = vmatpush2.msra.mxu0 0.0
    %920 = vmatprep.subr.mxu0 0.0
    %921 = vmatpush2.msra.mxu0 0.0
    %922 = vmatprep.subr.mxu0 0.0
    %923 = vmatpush2.msra.mxu0 0.0
    %924 = vmatprep.subr.mxu0 0.0
    %925 = vmatpush2.msra.mxu0 0.0
    %926 = vmatprep.subr.mxu0 0.0
    %927 = vmatpush2.msra.mxu0 0.0
    %928 = vmatprep.subr.mxu0 0.0
    %929 = vmatpush2.msra.mxu0 0.0
    %930 = vmatprep.subr.mxu0 0.0
    %931 = vmatpush2.msra.mxu0 0.0
    %932 = vmatprep.mubr.f32.mxu0 0.0
    %933 = vmatmul.mubr.f32.gmra.mxu0 %v866
    %v934 = vpop.f32.mrf.mxu0
    %v935 = vadd.f32 0.0, %v934
    %v936 = vpop.f32.mrf.mxu0
    %937 = vdwg.mxu0
    %v939 = vrot.slane %v935, 4
    %v941 = vadd.f32 %v221, %v939
    %v942 = vxor.u32 %v941, 2147483648
    %v943 = vmul.f32 %v942, 1.442695
    %v944 = vpow.pop %v943
    %v945 = vadd.f32 %v944, 1.0
    %v946 = vrcp.pop %v945
    %v947 = vmul.f32 1.0, %v946
    %v948 = vtanh.pop %v941
    %v950 = vrot.slane %v855, 6
    %v952 = vmul.f32 %v947, %v950
    %954 = vrot.lane.b32.xlu0 %v948, 64
    %v955 = vpop.permute.xlu0 %954
    %v957 = vmul.f32 %v947, %v955
    %959 = vrot.lane.b32.xlu0 %v957, 32
    %v960 = vpop.permute.xlu0 %959
    %v962 = vadd.f32 %v952, %v960
    %v963 = vtanh.pop %v962
    %965 = vrot.lane.b32.xlu0 %v963, 64
    %v966 = vpop.permute.xlu0 %965
    %v968 = vmul.f32 %v947, %v966
    %v970 = vrot.slane %v968, 4
    %971 = vrot.lane.b32.xlu0 %v970, 32
    %v972 = vpop.permute.xlu0 %971
    %v973 = vsel %vm142, %v972, 0
    %975 = vmatprep.subr.mxu0 0.0
    %976 = vmatpush1.msra.mxu0 0.0
    %977 = vmatprep.subr.mxu0 0.0
    %978 = vmatpush1.msra.mxu0 0.0
    %979 = vmatprep.subr.mxu0 0.0
    %980 = vmatpush1.msra.mxu0 0.0
    %981 = vmatprep.subr.mxu0 0.0
    %982 = vmatpush1.msra.mxu0 0.0
    %983 = vmatprep.subr.mxu0 0.0
    %984 = vmatpush1.msra.mxu0 0.0
    %985 = vmatprep.subr.mxu0 0.0
    %986 = vmatpush1.msra.mxu0 0.0
    %987 = vmatprep.subr.mxu0 0.0
    %988 = vmatpush1.msra.mxu0 0.0
    %989 = vmatprep.subr.mxu0 0.0
    %990 = vmatpush1.msra.mxu0 0.0
    %991 = vmatprep.subr.mxu0 0.0
    %992 = vmatpush1.msra.mxu0 0.0
    %993 = vmatprep.subr.mxu0 0.0
    %994 = vmatpush1.msra.mxu0 0.0
    %995 = vmatprep.subr.mxu0 0.0
    %996 = vmatpush1.msra.mxu0 0.0
    %997 = vmatprep.subr.mxu0 0.0
    %998 = vmatpush1.msra.mxu0 0.0
    %999 = vmatprep.subr.mxu0 0.0
    %1000 = vmatpush1.msra.mxu0 %v227
    %1001 = vmatprep.subr.mxu0 0.0
    %1002 = vmatpush1.msra.mxu0 %v226
    %1003 = vmatprep.subr.mxu0 0.0
    %1004 = vmatpush1.msra.mxu0 %v225
    %1005 = vmatprep.subr.mxu0 0.0
    %1006 = vmatpush1.msra.mxu0 %v224
    %1007 = vmatprep.subr.mxu0 0.0
    %1008 = vmatpush2.msra.mxu0 0.0
    %1009 = vmatprep.subr.mxu0 0.0
    %1010 = vmatpush2.msra.mxu0 0.0
    %1011 = vmatprep.subr.mxu0 0.0
    %1012 = vmatpush2.msra.mxu0 0.0
    %1013 = vmatprep.subr.mxu0 0.0
    %1014 = vmatpush2.msra.mxu0 0.0
    %1015 = vmatprep.subr.mxu0 0.0
    %1016 = vmatpush2.msra.mxu0 0.0
    %1017 = vmatprep.subr.mxu0 0.0
    %1018 = vmatpush2.msra.mxu0 0.0
    %1019 = vmatprep.subr.mxu0 0.0
    %1020 = vmatpush2.msra.mxu0 0.0
    %1021 = vmatprep.subr.mxu0 0.0
    %1022 = vmatpush2.msra.mxu0 0.0
    %1023 = vmatprep.subr.mxu0 0.0
    %1024 = vmatpush2.msra.mxu0 0.0
    %1025 = vmatprep.subr.mxu0 0.0
    %1026 = vmatpush2.msra.mxu0 0.0
    %1027 = vmatprep.subr.mxu0 0.0
    %1028 = vmatpush2.msra.mxu0 0.0
    %1029 = vmatprep.subr.mxu0 0.0
    %1030 = vmatpush2.msra.mxu0 0.0
    %1031 = vmatprep.subr.mxu0 0.0
    %1032 = vmatpush2.msra.mxu0 0.0
    %1033 = vmatprep.subr.mxu0 0.0
    %1034 = vmatpush2.msra.mxu0 0.0
    %1035 = vmatprep.subr.mxu0 0.0
    %1036 = vmatpush2.msra.mxu0 0.0
    %1037 = vmatprep.subr.mxu0 0.0
    %1038 = vmatpush2.msra.mxu0 0.0
    %1039 = vmatprep.mubr.f32.mxu0 0.0
    %1040 = vmatmul.mubr.f32.gmra.mxu0 %v973
    %v1041 = vpop.f32.mrf.mxu0
    %v1042 = vadd.f32 0.0, %v1041
    %v1043 = vpop.f32.mrf.mxu0
    %1044 = vdwg.mxu0
    %v1046 = vrot.slane %v1042, 2
    %v1048 = vadd.f32 %v221, %v1046
    %v1049 = vxor.u32 %v1048, 2147483648
    %v1050 = vmul.f32 %v1049, 1.442695
    %v1051 = vpow.pop %v1050
    %v1052 = vadd.f32 %v1051, 1.0
    %v1053 = vrcp.pop %v1052
    %v1054 = vmul.f32 1.0, %v1053
    %v1055 = vtanh.pop %v1048
    %v1057 = vrot.slane %v962, 6
    %v1059 = vmul.f32 %v1054, %v1057
    %1061 = vrot.lane.b32.xlu0 %v1055, 64
    %v1062 = vpop.permute.xlu0 %1061
    %v1064 = vmul.f32 %v1054, %v1062
    %1066 = vrot.lane.b32.xlu0 %v1064, 32
    %v1067 = vpop.permute.xlu0 %1066
    %v1069 = vadd.f32 %v1059, %v1067
    %v1070 = vtanh.pop %v1069
    %1072 = vrot.lane.b32.xlu0 %v1070, 64
    %v1073 = vpop.permute.xlu0 %1072
    %v1075 = vmul.f32 %v1054, %v1073
    %v1076 = vld [vmem:[#allocation7] sm:$0xff]
    %v1077 = vld [vmem:[#allocation7 + $0x8] sm:$0xff]
    %v1078 = vld [vmem:[#allocation7 + $0x10] sm:$0xff]
    %v1079 = vld [vmem:[#allocation7 + $0x18] sm:$0xff]
    %v1080 = vld [vmem:[%s6] sm:$0x1]
    %v1082 = vlaneseq
    %v1083 = vshrl.u32 %v1082, 7
    %v1084 = vsub.s32 0, %v1083
    %v1085 = vrot.slane %v1080, %v1084
    %v1088 = vrot.slane %v1075, 6
    %1089 = vrot.lane.b32.xlu0 %v1088, 32
    %v1090 = vpop.permute.xlu0 %1089
    %v1091 = vsel %vm142, %v1090, 0
    %1093 = vmatprep.subr.mxu0 0.0
    %1094 = vmatpush1.msra.mxu0 0.0
    %1095 = vmatprep.subr.mxu0 0.0
    %1096 = vmatpush1.msra.mxu0 0.0
    %1097 = vmatprep.subr.mxu0 0.0
    %1098 = vmatpush1.msra.mxu0 0.0
    %1099 = vmatprep.subr.mxu0 0.0
    %1100 = vmatpush1.msra.mxu0 0.0
    %1101 = vmatprep.subr.mxu0 0.0
    %1102 = vmatpush1.msra.mxu0 0.0
    %1103 = vmatprep.subr.mxu0 0.0
    %1104 = vmatpush1.msra.mxu0 0.0
    %1105 = vmatprep.subr.mxu0 0.0
    %1106 = vmatpush1.msra.mxu0 0.0
    %1107 = vmatprep.subr.mxu0 0.0
    %1108 = vmatpush1.msra.mxu0 0.0
    %1109 = vmatprep.subr.mxu0 0.0
    %1110 = vmatpush1.msra.mxu0 0.0
    %1111 = vmatprep.subr.mxu0 0.0
    %1112 = vmatpush1.msra.mxu0 0.0
    %1113 = vmatprep.subr.mxu0 0.0
    %1114 = vmatpush1.msra.mxu0 0.0
    %1115 = vmatprep.subr.mxu0 0.0
    %1116 = vmatpush1.msra.mxu0 0.0
    %1117 = vmatprep.subr.mxu0 0.0
    %1118 = vmatpush1.msra.mxu0 %v1079
    %1119 = vmatprep.subr.mxu0 0.0
    %1120 = vmatpush1.msra.mxu0 %v1078
    %1121 = vmatprep.subr.mxu0 0.0
    %1122 = vmatpush1.msra.mxu0 %v1077
    %1123 = vmatprep.subr.mxu0 0.0
    %1124 = vmatpush1.msra.mxu0 %v1076
    %1125 = vmatprep.subr.mxu0 0.0
    %1126 = vmatpush2.msra.mxu0 0.0
    %1127 = vmatprep.subr.mxu0 0.0
    %1128 = vmatpush2.msra.mxu0 0.0
    %1129 = vmatprep.subr.mxu0 0.0
    %1130 = vmatpush2.msra.mxu0 0.0
    %1131 = vmatprep.subr.mxu0 0.0
    %1132 = vmatpush2.msra.mxu0 0.0
    %1133 = vmatprep.subr.mxu0 0.0
    %1134 = vmatpush2.msra.mxu0 0.0
    %1135 = vmatprep.subr.mxu0 0.0
    %1136 = vmatpush2.msra.mxu0 0.0
    %1137 = vmatprep.subr.mxu0 0.0
    %1138 = vmatpush2.msra.mxu0 0.0
    %1139 = vmatprep.subr.mxu0 0.0
    %1140 = vmatpush2.msra.mxu0 0.0
    %1141 = vmatprep.subr.mxu0 0.0
    %1142 = vmatpush2.msra.mxu0 0.0
    %1143 = vmatprep.subr.mxu0 0.0
    %1144 = vmatpush2.msra.mxu0 0.0
    %1145 = vmatprep.subr.mxu0 0.0
    %1146 = vmatpush2.msra.mxu0 0.0
    %1147 = vmatprep.subr.mxu0 0.0
    %1148 = vmatpush2.msra.mxu0 0.0
    %1149 = vmatprep.subr.mxu0 0.0
    %1150 = vmatpush2.msra.mxu0 0.0
    %1151 = vmatprep.subr.mxu0 0.0
    %1152 = vmatpush2.msra.mxu0 0.0
    %1153 = vmatprep.subr.mxu0 0.0
    %1154 = vmatpush2.msra.mxu0 0.0
    %1155 = vmatprep.subr.mxu0 0.0
    %1156 = vmatpush2.msra.mxu0 0.0
    %1157 = vmatprep.mubr.f32.mxu0 0.0
    %1158 = vmatmul.mubr.f32.gmra.mxu0 %v1091
    %v1159 = vpop.f32.mrf.mxu0
    %v1160 = vadd.f32 %v1085, %v1159
    %v1161 = vpop.f32.mrf.mxu0
    %1162 = vdwg.mxu0
    %1163 = vst [vmem:[#allocation8] sm:$0x3] %v1160
    %1164 = vrot.lane.b32.xlu0 %v1075, 32
    %v1165 = vpop.permute.xlu0 %1164
    %vm1167 = vcmask 261126
    %1168 = vst.msk [vmem:[#allocation9 - $0x6] sm:$0xc0] %vm1167, %v1165
    %1170 = vrot.lane.b32.xlu0 %v1069, 96
    %v1171 = vpop.permute.xlu0 %1170
    %1173 = vst.msk [vmem:[#allocation11 - $0x6] sm:$0xc0] %vm1167, %v1171
    // Predicated region
    $region46: #{tpu_custom_call.1} parent=1 // pred_check
      _
    $region47: #{tpu_custom_call.1} parent=1 // pred_check_branch
      %1175 = sbr.rel (0) target = $region49
    $region48: #{tpu_custom_call.1} parent=1 // pred_region
      %s1177 = ssub.s32 32, 32
      %1178 = vsyncadd [#allocation5], %s1177
      %s1180 = sshll.u32 [#allocation8], 4
      %s1181 = int_to_ptr.vmem [resolvable:$true] %s1180
      %1183 = dma.vmem_to_hbm [thread:$0]  %s1181, 32, %s9, [#allocation5]
    $region49: #{tpu_custom_call.1} parent=1 // pred_fallthru
      _
    // Predicated region
    $region50: #{tpu_custom_call.1} parent=1 // pred_check
      _
    $region51: #{tpu_custom_call.1} parent=1 // pred_check_branch
      %1185 = sbr.rel (0) target = $region53
    $region52: #{tpu_custom_call.1} parent=1 // pred_region
      %s1187 = ssub.s32 32, 32
      %1188 = vsyncadd [#allocation10], %s1187
      %s1190 = sshll.u32 [#allocation9], 4
      %s1191 = int_to_ptr.vmem [resolvable:$true] %s1190
      %1193 = dma.vmem_to_hbm [thread:$0]  %s1191, 32, %s10, [#allocation10]
    $region53: #{tpu_custom_call.1} parent=1 // pred_fallthru
      _
    // Predicated region
    $region54: #{tpu_custom_call.1} parent=1 // pred_check
      _
    $region55: #{tpu_custom_call.1} parent=1 // pred_check_branch
      %1195 = sbr.rel (0) target = $region57
    $region56: #{tpu_custom_call.1} parent=1 // pred_region
      %s1197 = ssub.s32 32, 32
      %1198 = vsyncadd [#allocation10], %s1197
      %s1200 = sshll.u32 [#allocation11], 4
      %s1201 = int_to_ptr.vmem [resolvable:$true] %s1200
      %1203 = dma.vmem_to_hbm [thread:$0]  %s1201, 32, %s11, [#allocation10]
    $region57: #{tpu_custom_call.1} parent=1 // pred_fallthru
      _
    // Predicated region
    $region58: #{tpu_custom_call.1} parent=1 // pred_check
      _
    $region59: #{tpu_custom_call.1} parent=1 // pred_check_branch
      %1205 = sbr.rel (0) target = $region61
    $region60: #{tpu_custom_call.1} parent=1 // pred_region
      %1206 = dma.done [#allocation5], 32
    $region61: #{tpu_custom_call.1} parent=1 // pred_fallthru
      _
    // Predicated region
    $region62: #{tpu_custom_call.1} parent=1 // pred_check
      _
    $region63: #{tpu_custom_call.1} parent=1 // pred_check_branch
      %1208 = sbr.rel (0) target = $region65
    $region64: #{tpu_custom_call.1} parent=1 // pred_region
      %1209 = dma.done [#allocation10], 32
    $region65: #{tpu_custom_call.1} parent=1 // pred_fallthru
      _
    // Predicated region
    $region66: #{tpu_custom_call.1} parent=1 // pred_check
      _
    $region67: #{tpu_custom_call.1} parent=1 // pred_check_branch
      %1211 = sbr.rel (0) target = $region69
    $region68: #{tpu_custom_call.1} parent=1 // pred_region
      %1212 = dma.done [#allocation10], 32
    $region69: #{tpu_custom_call.1} parent=1 // pred_fallthru
      _
    %1213 = vsyncpa [#allocation4], 1
    %1214 = vsyncpa [#allocation5], 1
    %1215 = vsyncpa [#allocation10], 1
    %1216 = vsyncpa [#allocation6], 1

</llo_original>
